<compile_context>
chip_gen: v5e
topology: v5e:2x2
jax: 0.10.0
libtpu: 0.0.40
codegen_flags: <defaults>
</compile_context>

<pallas_src>
import functools

import numpy as np
import jax
import jax.numpy as jnp
from jax.experimental import pallas as pl
from jax.experimental.pallas import tpu as pltpu


# ----------------------------------------------------------------------------
# Fused Pallas kernel
# ----------------------------------------------------------------------------

def _shufflenet_block_kernel(
        x_ref, masks_ref, w1b_ref, o1b_ref, dwb_ref, odwb_ref, w5b_ref, o5b_ref,
        w1a_ref, o1a_ref, dwa_ref, odwa_ref, w5a_ref, o5a_ref,
        bnt_s_ref, bnt_o_ref, sel_ref,
        o_ref, yb_ref,
        *, H, W, KH, KW, pool_kh, pool_kw):
    """Whole ShuffleNetV1 block, fully VMEM-resident.

    Activation layout: channel-major, lane-flattened spatial (C, M), M = N*H*W,
    with flattened index m = n*H*W + h*W + w (M is a multiple of 128 -> lane-dense).
    masks_ref: (KH*KW, M) precomputed 0/1 border-validity masks per tap offset.
    """
    in_c = x_ref.shape[0]
    M = x_ref.shape[1]
    x = x_ref[...]

    def shift(v, s):
        # result[m] = v[(m + s) % M]  (XLU lane rotation; no VMEM copies)
        sh = (-s) % M
        if sh == 0:
            return v
        return pltpu.roll(v, shift=sh, axis=1)

    def dw_conv(v, taps):
        """Depthwise KHxKW conv, stride 1, zero 'same' padding, on (C, M).

        taps: (C, KH*KW) per-channel taps (BN scale folded in), or None for a
        plain window sum (used by the avg-pool shortcut).
        """
        acc = None
        k = 0
        for kh in range(KH):
            for kw in range(KW):
                dh = kh - (KH - 1) // 2
                dw = kw - (KW - 1) // 2
                nb = shift(v, dh * W + dw)
                if not (dh == 0 and dw == 0):
                    nb = nb * masks_ref[k:k + 1, :]      # precomputed halo mask
                if taps is not None:
                    nb = nb * taps[:, k:k + 1]
                acc = nb if acc is None else acc + nb
                k += 1
        return acc

    # ---------------- ShuffleNetV1UnitB ----------------
    # grouped 1x1 conv (+bias) -> BN -> ReLU ; channel_shuffle folded into weight rows
    h1 = jnp.maximum(
        jnp.dot(w1b_ref[...], x, preferred_element_type=jnp.float32) + o1b_ref[...], 0.0)
    # depthwise 3x3 (+bias) -> BN  (BN scale folded into taps, bias folded into offset)
    h2 = dw_conv(h1, dwb_ref[...]) + odwb_ref[...]
    # grouped 1x1 conv (+bias) -> BN
    h3 = jnp.dot(w5b_ref[...], h2, preferred_element_type=jnp.float32) + o5b_ref[...]
    # shortcut: F.avg_pool2d(x, (KH,KW), stride=1, pad='same', count_include_pad=True)
    sc = dw_conv(x, None) * (1.0 / (KH * KW))
    # ReLU(concat([shortcut, out])) written into channel slices of one VMEM buffer
    yb_ref[0:in_c, :] = jnp.maximum(sc, 0.0)
    yb_ref[in_c:, :] = jnp.maximum(h3, 0.0)
    yb = yb_ref[...]

    # ---------------- ShuffleNetV1UnitA ----------------
    a1 = jnp.maximum(
        jnp.dot(w1a_ref[...], yb, preferred_element_type=jnp.float32) + o1a_ref[...], 0.0)
    a2 = dw_conv(a1, dwa_ref[...]) + odwa_ref[...]
    a3 = jnp.dot(w5a_ref[...], a2, preferred_element_type=jnp.float32) + o5a_ref[...]
    ya = jnp.maximum(yb + a3, 0.0)

    # ---------------- block tail: BN -> ReLU -> MaxPool2d ----------------
    yt = jnp.maximum(ya * bnt_s_ref[...] + bnt_o_ref[...], 0.0)

    # Window max via lane rolls (valid window origins never straddle image borders).
    t = yt
    for dw in range(1, pool_kw):
        t = jnp.maximum(t, shift(yt, dw))
    v = t
    for dh in range(1, pool_kh):
        v = jnp.maximum(v, shift(t, dh * W))

    # Gather the strided window origins into a lane-dense (C, N*Ho*Wo) output
    # via a 0/1 selection matmul (exact: multiply by 1.0 / add 0.0).
    o_ref[...] = jnp.dot(v, sel_ref[...],
                         preferred_element_type=jnp.float32).astype(o_ref.dtype)
    # TODO(synk): nn.Dropout is identity in eval mode; training-mode dropout not implemented.
    # TODO(synk): 'ave2d' pooling branch not implemented (demo config uses 'max2d').


# ----------------------------------------------------------------------------
# Wrapper
# ----------------------------------------------------------------------------

def shufflenet_block_forward(x_nchw, ops, *, H, W, kernel, pool_kernel, pool_stride):
    """NCHW in -> NCHW out. Everything between the boundary transposes is one pallas_call."""
    N, Cin, Hx, Wx = x_nchw.shape
    assert (Hx, Wx) == (H, W)
    KH, KW = kernel
    PKH, PKW = pool_kernel
    SH, SW = pool_stride
    M = N * H * W
    out_c = ops['bnt_s'].shape[0]
    Ho = (H - PKH) // SH + 1
    Wo = (W - PKW) // SW + 1

    # Boundary layout glue only: NCHW -> channel-major, lane-flattened (C, N*H*W).
    x_cm = jnp.transpose(x_nchw, (1, 0, 2, 3)).reshape(Cin, M)

    out_cm = pl.pallas_call(
        functools.partial(_shufflenet_block_kernel, H=H, W=W, KH=KH, KW=KW,
                          pool_kh=PKH, pool_kw=PKW),
        out_shape=jax.ShapeDtypeStruct((out_c, N * Ho * Wo), jnp.float32),
        scratch_shapes=[pltpu.VMEM((out_c, M), jnp.float32)],
    )(x_cm, ops['masks'], ops['w1b'], ops['o1b'], ops['dwb'], ops['odwb'],
      ops['w5b'], ops['o5b'], ops['w1a'], ops['o1a'],
      ops['dwa'], ops['odwa'], ops['w5a'], ops['o5a'],
      ops['bnt_s'], ops['bnt_o'], ops['sel'])

    # Boundary layout glue back to NCHW.
    return jnp.transpose(out_cm.reshape(out_c, N, Ho, Wo), (1, 0, 2, 3))


# ----------------------------------------------------------------------------
# Pure-JAX reference (same folded parameters) for in-script validation
# ----------------------------------------------------------------------------

def reference_forward(x_nchw, ops, *, kernel, pool_kernel, pool_stride):
    KH, KW = kernel
    ph, pw = (KH - 1) // 2, (KW - 1) // 2

    def conv1x1(v, w, o):
        y = jax.lax.conv_general_dilated(
            v, w[:, :, None, None], (1, 1), 'VALID',
            dimension_numbers=('NCHW', 'OIHW', 'NCHW'))
        return y + o.reshape(1, -1, 1, 1)

    def dwconv(v, taps, o):
        C = v.shape[1]
        y = jax.lax.conv_general_dilated(
            v, taps.reshape(C, 1, KH, KW), (1, 1), [(ph, ph), (pw, pw)],
            dimension_numbers=('NCHW', 'OIHW', 'NCHW'), feature_group_count=C)
        return y + o.reshape(1, -1, 1, 1)

    relu = lambda t: jnp.maximum(t, 0.0)

    # UnitB
    h1 = relu(conv1x1(x_nchw, ops['w1b'], ops['o1b']))
    h2 = dwconv(h1, ops['dwb'], ops['odwb'])
    h3 = conv1x1(h2, ops['w5b'], ops['o5b'])
    sc = jax.lax.reduce_window(
        x_nchw, 0.0, jax.lax.add, (1, 1, KH, KW), (1, 1, 1, 1),
        [(0, 0), (0, 0), (ph, ph), (pw, pw)]) / float(KH * KW)
    yb = relu(jnp.concatenate([sc, h3], axis=1))

    # UnitA
    a1 = relu(conv1x1(yb, ops['w1a'], ops['o1a']))
    a2 = dwconv(a1, ops['dwa'], ops['odwa'])
    a3 = conv1x1(a2, ops['w5a'], ops['o5a'])
    ya = relu(yb + a3)

    # tail: BN -> ReLU -> MaxPool2d
    yt = relu(ya * ops['bnt_s'].reshape(1, -1, 1, 1) + ops['bnt_o'].reshape(1, -1, 1, 1))
    PKH, PKW = pool_kernel
    SH, SW = pool_stride
    return jax.lax.reduce_window(yt, -jnp.inf, jax.lax.max,
                                 (1, 1, PKH, PKW), (1, 1, SH, SW), 'VALID')


# ----------------------------------------------------------------------------
# Parameter construction with BN / bias / channel-shuffle folding
# ----------------------------------------------------------------------------

def _bn_fold(key, c, eps=1e-5):
    """Inference-mode BatchNorm folded to per-channel (scale, offset), synthetic stats."""
    k1, k2, k3, k4 = jax.random.split(key, 4)
    gamma = 1.0 + 0.1 * jax.random.normal(k1, (c,))
    beta = 0.1 * jax.random.normal(k2, (c,))
    mean = 0.1 * jax.random.normal(k3, (c,))
    var = 1.0 + 0.1 * jax.random.uniform(k4, (c,))
    scale = (gamma / jnp.sqrt(var + eps)).astype(jnp.float32)
    off = (beta - mean * scale).astype(jnp.float32)
    return scale, off


def _group_conv_dense(key, cin, cout, groups, std=0.2):
    """Dense (Cout, Cin) block-diagonal matrix equivalent to a torch grouped 1x1 conv."""
    cin_g, cout_g = cin // groups, cout // groups
    wg = std * jax.random.normal(key, (groups, cout_g, cin_g))
    w = jnp.zeros((cout, cin), jnp.float32)
    for g in range(groups):
        w = w.at[g * cout_g:(g + 1) * cout_g, g * cin_g:(g + 1) * cin_g].set(wg[g])
    return w.astype(jnp.float32)


def _shuffle_perm(c, groups):
    """perm[new_channel] = old_channel for the torch channel_shuffle permutation."""
    cpg = c // groups
    return np.array([(j % groups) * cpg + (j // groups) for j in range(c)], dtype=np.int32)


def init_folded_params(key, in_c, out_c, groups, kernel, N, H, W, pool_kernel, pool_stride):
    """Deterministic random module parameters, pre-folded into the fused-kernel operands."""
    KH, KW = kernel
    out_b = out_c - in_c            # UnitB pre-concat output channels
    bott_b = out_b // 4             # branch == 1
    bott_a = out_c // 4
    ks = jax.random.split(key, 19)
    ops = {}

    # ---- ShuffleNetV1UnitB ----
    w1 = _group_conv_dense(ks[0], in_c, bott_b, groups)
    b1 = 0.05 * jax.random.normal(ks[1], (bott_b,))
    s2, f2 = _bn_fold(ks[2], bott_b)
    permb = _shuffle_perm(bott_b, groups)
    ops['w1b'] = (w1 * s2[:, None])[permb]                      # BN + shuffle folded
    ops['o1b'] = (s2 * b1 + f2)[permb].reshape(bott_b, 1)

    dwt = 0.2 * jax.random.normal(ks[3], (bott_b, KH * KW))
    bdw = 0.05 * jax.random.normal(ks[4], (bott_b,))
    s4, f4 = _bn_fold(ks[5], bott_b)
    ops['dwb'] = (dwt * s4[:, None]).astype(jnp.float32)
    ops['odwb'] = (s4 * bdw + f4).reshape(bott_b, 1)

    w5 = _group_conv_dense(ks[6], bott_b, out_b, groups)
    b5 = 0.05 * jax.random.normal(ks[7], (out_b,))
    s6, f6 = _bn_fold(ks[8], out_b)
    ops['w5b'] = w5 * s6[:, None]
    ops['o5b'] = (s6 * b5 + f6).reshape(out_b, 1)

    # ---- ShuffleNetV1UnitA ----
    w1a = _group_conv_dense(ks[9], out_c, bott_a, groups)
    b1a = 0.05 * jax.random.normal(ks[10], (bott_a,))
    s2a, f2a = _bn_fold(ks[11], bott_a)
    perma = _shuffle_perm(bott_a, groups)
    ops['w1a'] = (w1a * s2a[:, None])[perma]
    ops['o1a'] = (s2a * b1a + f2a)[perma].reshape(bott_a, 1)

    dwta = 0.2 * jax.random.normal(ks[12], (bott_a, KH * KW))
    bdwa = 0.05 * jax.random.normal(ks[13], (bott_a,))
    s4a, f4a = _bn_fold(ks[14], bott_a)
    ops['dwa'] = (dwta * s4a[:, None]).astype(jnp.float32)
    ops['odwa'] = (s4a * bdwa + f4a).reshape(bott_a, 1)

    w5a = _group_conv_dense(ks[15], bott_a, out_c, groups)
    b5a = 0.05 * jax.random.normal(ks[16], (out_c,))
    s6a, f6a = _bn_fold(ks[17], out_c)
    ops['w5a'] = w5a * s6a[:, None]
    ops['o5a'] = (s6a * b5a + f6a).reshape(out_c, 1)

    # ---- block tail BN ----
    st, ft = _bn_fold(ks[18], out_c)
    ops['bnt_s'] = st.reshape(out_c, 1)
    ops['bnt_o'] = ft.reshape(out_c, 1)

    # ---- precomputed halo-validity masks for the (KH,KW) depthwise taps ----
    M = N * H * W
    lane = np.arange(M)
    w_idx = lane % W
    h_idx = (lane // W) % H
    masks = np.ones((KH * KW, M), np.float32)
    k = 0
    for kh in range(KH):
        for kw in range(KW):
            dh = kh - (KH - 1) // 2
            dw = kw - (KW - 1) // 2
            valid = ((w_idx + dw >= 0) & (w_idx + dw < W) &
                     (h_idx + dh >= 0) & (h_idx + dh < H))
            masks[k] = valid.astype(np.float32)
            k += 1
    ops['masks'] = jnp.asarray(masks)

    # ---- 0/1 selection matrix gathering max-pool window origins (lane -> lane) ----
    PKH, PKW = pool_kernel
    SH, SW = pool_stride
    Ho = (H - PKH) // SH + 1
    Wo = (W - PKW) // SW + 1
    sel = np.zeros((M, N * Ho * Wo), np.float32)
    for n in range(N):
        for ho in range(Ho):
            for wo in range(Wo):
                sel[n * H * W + (ho * SH) * W + (wo * SW),
                    n * Ho * Wo + ho * Wo + wo] = 1.0
    ops['sel'] = jnp.asarray(sel)
    return ops


# ----------------------------------------------------------------------------
# Demo
# ----------------------------------------------------------------------------

if __name__ == "__main__":
    key = jax.random.PRNGKey(0)
    kx, kp = jax.random.split(key)

    shufflenet_dict = dict(in_channels=8, out_channels=24, kernel=(3, 3), groups=2)
    pooling_dict = dict(pooling_type='max2d', pooling_kernel=(2, 2), pooling_stride=(2, 2))
    dropout_dict = dict(drop_rate=0.1)   # eval mode -> identity

    N, C, H, W = 2, shufflenet_dict['in_channels'], 16, 16
    x_nchw = jax.random.normal(kx, (N, C, H, W), jnp.float32)   # PyTorch-style NCHW input

    ops = init_folded_params(
        kp, shufflenet_dict['in_channels'], shufflenet_dict['out_channels'],
        shufflenet_dict['groups'], shufflenet_dict['kernel'],
        N, H, W, pooling_dict['pooling_kernel'], pooling_dict['pooling_stride'])

    fwd = jax.jit(functools.partial(
        shufflenet_block_forward, H=H, W=W,
        kernel=shufflenet_dict['kernel'],
        pool_kernel=pooling_dict['pooling_kernel'],
        pool_stride=pooling_dict['pooling_stride']))

    y_nchw = fwd(x_nchw, ops)                                   # (2, 24, 8, 8)
    jax.block_until_ready(y_nchw)
    assert y_nchw.shape == (N, shufflenet_dict['out_channels'], H // 2, W // 2)

    # Validate against a pure-JAX reference on the same folded parameters.
    y_ref = reference_forward(
        x_nchw, ops, kernel=shufflenet_dict['kernel'],
        pool_kernel=pooling_dict['pooling_kernel'],
        pool_stride=pooling_dict['pooling_stride'])
    np.testing.assert_allclose(np.asarray(y_nchw), np.asarray(y_ref),
                               rtol=3e-2, atol=3e-2)
    print("KERNEL_OK")
</pallas_src>

<mosaic_0001>
module attributes {stable_mosaic.version = 11 : i64} {
  func.func @_shufflenet_block_kernel(%arg0: memref<8x512xf32, #tpu.memory_space<vmem>>, %arg1: memref<9x512xf32, #tpu.memory_space<vmem>>, %arg2: memref<4x8xf32, #tpu.memory_space<vmem>>, %arg3: memref<4x1xf32, #tpu.memory_space<vmem>>, %arg4: memref<4x9xf32, #tpu.memory_space<vmem>>, %arg5: memref<4x1xf32, #tpu.memory_space<vmem>>, %arg6: memref<16x4xf32, #tpu.memory_space<vmem>>, %arg7: memref<16x1xf32, #tpu.memory_space<vmem>>, %arg8: memref<6x24xf32, #tpu.memory_space<vmem>>, %arg9: memref<6x1xf32, #tpu.memory_space<vmem>>, %arg10: memref<6x9xf32, #tpu.memory_space<vmem>>, %arg11: memref<6x1xf32, #tpu.memory_space<vmem>>, %arg12: memref<24x6xf32, #tpu.memory_space<vmem>>, %arg13: memref<24x1xf32, #tpu.memory_space<vmem>>, %arg14: memref<24x1xf32, #tpu.memory_space<vmem>>, %arg15: memref<24x1xf32, #tpu.memory_space<vmem>>, %arg16: memref<512x128xf32, #tpu.memory_space<vmem>>, %arg17: memref<24x128xf32, #tpu.memory_space<vmem>>, %arg18: memref<24x512xf32, #tpu.memory_space<vmem>>) attributes {dimension_semantics = [], scalar_prefetch = 0 : i64, scratch_operands = 1 : i64, tpu.core_type = #tpu.core_type<tc>} {
    %c0 = arith.constant 0 : index
    %c0_0 = arith.constant 0 : index
    %0 = vector.load %arg0[%c0, %c0_0] : memref<8x512xf32, #tpu.memory_space<vmem>>, vector<8x512xf32>
    %c0_1 = arith.constant 0 : index
    %c0_2 = arith.constant 0 : index
    %1 = vector.load %arg2[%c0_1, %c0_2] : memref<4x8xf32, #tpu.memory_space<vmem>>, vector<4x8xf32>
    %cst = arith.constant dense<0.000000e+00> : vector<4x512xf32>
    %2 = tpu.matmul %1, %0, %cst {dimension_numbers = #tpu.dot_dimension_numbers<[1], [0], [0], [1], [0, 0, 1, 1], [], []>} : vector<4x8xf32>, vector<8x512xf32>, vector<4x512xf32> -> vector<4x512xf32>
    %c0_3 = arith.constant 0 : index
    %c0_4 = arith.constant 0 : index
    %3 = vector.load %arg3[%c0_3, %c0_4] : memref<4x1xf32, #tpu.memory_space<vmem>>, vector<4x1xf32>
    %4 = vector.broadcast %3 : vector<4x1xf32> to vector<4x512xf32>
    %5 = arith.addf %2, %4 : vector<4x512xf32>
    %cst_5 = arith.constant 0.000000e+00 : f32
    %6 = vector.broadcast %cst_5 : f32 to vector<4x512xf32>
    %7 = arith.maximumf %5, %6 : vector<4x512xf32>
    %c0_6 = arith.constant 0 : index
    %c0_7 = arith.constant 0 : index
    %8 = vector.load %arg4[%c0_6, %c0_7] : memref<4x9xf32, #tpu.memory_space<vmem>>, vector<4x9xf32>
    %c17_i32 = arith.constant 17 : i32
    %9 = tpu.dynamic_rotate %7 by %c17_i32 dim 1 : vector<4x512xf32>, i32 -> vector<4x512xf32>
    %c0_8 = arith.constant 0 : index
    %c0_9 = arith.constant 0 : index
    %10 = vector.load %arg1[%c0_8, %c0_9] : memref<9x512xf32, #tpu.memory_space<vmem>>, vector<1x512xf32>
    %11 = vector.broadcast %10 : vector<1x512xf32> to vector<4x512xf32>
    %12 = arith.mulf %9, %11 : vector<4x512xf32>
    %13 = vector.extract_strided_slice %8 {offsets = [0, 0], sizes = [4, 1], strides = [1, 1]} : vector<4x9xf32> to vector<4x1xf32>
    %14 = vector.broadcast %13 : vector<4x1xf32> to vector<4x512xf32>
    %15 = arith.mulf %12, %14 : vector<4x512xf32>
    %c16_i32 = arith.constant 16 : i32
    %16 = tpu.dynamic_rotate %7 by %c16_i32 dim 1 : vector<4x512xf32>, i32 -> vector<4x512xf32>
    %c1 = arith.constant 1 : index
    %c0_10 = arith.constant 0 : index
    %17 = vector.load %arg1[%c1, %c0_10] : memref<9x512xf32, #tpu.memory_space<vmem>>, vector<1x512xf32>
    %18 = vector.broadcast %17 : vector<1x512xf32> to vector<4x512xf32>
    %19 = arith.mulf %16, %18 : vector<4x512xf32>
    %20 = vector.extract_strided_slice %8 {offsets = [0, 1], sizes = [4, 1], strides = [1, 1]} : vector<4x9xf32> to vector<4x1xf32>
    %21 = vector.broadcast %20 : vector<4x1xf32> to vector<4x512xf32>
    %22 = arith.mulf %19, %21 : vector<4x512xf32>
    %23 = arith.addf %15, %22 : vector<4x512xf32>
    %c15_i32 = arith.constant 15 : i32
    %24 = tpu.dynamic_rotate %7 by %c15_i32 dim 1 : vector<4x512xf32>, i32 -> vector<4x512xf32>
    %c2 = arith.constant 2 : index
    %c0_11 = arith.constant 0 : index
    %25 = vector.load %arg1[%c2, %c0_11] : memref<9x512xf32, #tpu.memory_space<vmem>>, vector<1x512xf32>
    %26 = vector.broadcast %25 : vector<1x512xf32> to vector<4x512xf32>
    %27 = arith.mulf %24, %26 : vector<4x512xf32>
    %28 = vector.extract_strided_slice %8 {offsets = [0, 2], sizes = [4, 1], strides = [1, 1]} : vector<4x9xf32> to vector<4x1xf32>
    %29 = vector.broadcast %28 : vector<4x1xf32> to vector<4x512xf32>
    %30 = arith.mulf %27, %29 : vector<4x512xf32>
    %31 = arith.addf %23, %30 : vector<4x512xf32>
    %c1_i32 = arith.constant 1 : i32
    %32 = tpu.dynamic_rotate %7 by %c1_i32 dim 1 : vector<4x512xf32>, i32 -> vector<4x512xf32>
    %c3 = arith.constant 3 : index
    %c0_12 = arith.constant 0 : index
    %33 = vector.load %arg1[%c3, %c0_12] : memref<9x512xf32, #tpu.memory_space<vmem>>, vector<1x512xf32>
    %34 = vector.broadcast %33 : vector<1x512xf32> to vector<4x512xf32>
    %35 = arith.mulf %32, %34 : vector<4x512xf32>
    %36 = vector.extract_strided_slice %8 {offsets = [0, 3], sizes = [4, 1], strides = [1, 1]} : vector<4x9xf32> to vector<4x1xf32>
    %37 = vector.broadcast %36 : vector<4x1xf32> to vector<4x512xf32>
    %38 = arith.mulf %35, %37 : vector<4x512xf32>
    %39 = arith.addf %31, %38 : vector<4x512xf32>
    %40 = vector.extract_strided_slice %8 {offsets = [0, 4], sizes = [4, 1], strides = [1, 1]} : vector<4x9xf32> to vector<4x1xf32>
    %41 = vector.broadcast %40 : vector<4x1xf32> to vector<4x512xf32>
    %42 = arith.mulf %7, %41 : vector<4x512xf32>
    %43 = arith.addf %39, %42 : vector<4x512xf32>
    %c511_i32 = arith.constant 511 : i32
    %44 = tpu.dynamic_rotate %7 by %c511_i32 dim 1 : vector<4x512xf32>, i32 -> vector<4x512xf32>
    %c5 = arith.constant 5 : index
    %c0_13 = arith.constant 0 : index
    %45 = vector.load %arg1[%c5, %c0_13] : memref<9x512xf32, #tpu.memory_space<vmem>>, vector<1x512xf32>
    %46 = vector.broadcast %45 : vector<1x512xf32> to vector<4x512xf32>
    %47 = arith.mulf %44, %46 : vector<4x512xf32>
    %48 = vector.extract_strided_slice %8 {offsets = [0, 5], sizes = [4, 1], strides = [1, 1]} : vector<4x9xf32> to vector<4x1xf32>
    %49 = vector.broadcast %48 : vector<4x1xf32> to vector<4x512xf32>
    %50 = arith.mulf %47, %49 : vector<4x512xf32>
    %51 = arith.addf %43, %50 : vector<4x512xf32>
    %c497_i32 = arith.constant 497 : i32
    %52 = tpu.dynamic_rotate %7 by %c497_i32 dim 1 : vector<4x512xf32>, i32 -> vector<4x512xf32>
    %c6 = arith.constant 6 : index
    %c0_14 = arith.constant 0 : index
    %53 = vector.load %arg1[%c6, %c0_14] : memref<9x512xf32, #tpu.memory_space<vmem>>, vector<1x512xf32>
    %54 = vector.broadcast %53 : vector<1x512xf32> to vector<4x512xf32>
    %55 = arith.mulf %52, %54 : vector<4x512xf32>
    %56 = vector.extract_strided_slice %8 {offsets = [0, 6], sizes = [4, 1], strides = [1, 1]} : vector<4x9xf32> to vector<4x1xf32>
    %57 = vector.broadcast %56 : vector<4x1xf32> to vector<4x512xf32>
    %58 = arith.mulf %55, %57 : vector<4x512xf32>
    %59 = arith.addf %51, %58 : vector<4x512xf32>
    %c496_i32 = arith.constant 496 : i32
    %60 = tpu.dynamic_rotate %7 by %c496_i32 dim 1 : vector<4x512xf32>, i32 -> vector<4x512xf32>
    %c7 = arith.constant 7 : index
    %c0_15 = arith.constant 0 : index
    %61 = vector.load %arg1[%c7, %c0_15] : memref<9x512xf32, #tpu.memory_space<vmem>>, vector<1x512xf32>
    %62 = vector.broadcast %61 : vector<1x512xf32> to vector<4x512xf32>
    %63 = arith.mulf %60, %62 : vector<4x512xf32>
    %64 = vector.extract_strided_slice %8 {offsets = [0, 7], sizes = [4, 1], strides = [1, 1]} : vector<4x9xf32> to vector<4x1xf32>
    %65 = vector.broadcast %64 : vector<4x1xf32> to vector<4x512xf32>
    %66 = arith.mulf %63, %65 : vector<4x512xf32>
    %67 = arith.addf %59, %66 : vector<4x512xf32>
    %c495_i32 = arith.constant 495 : i32
    %68 = tpu.dynamic_rotate %7 by %c495_i32 dim 1 : vector<4x512xf32>, i32 -> vector<4x512xf32>
    %c8 = arith.constant 8 : index
    %c0_16 = arith.constant 0 : index
    %69 = vector.load %arg1[%c8, %c0_16] : memref<9x512xf32, #tpu.memory_space<vmem>>, vector<1x512xf32>
    %70 = vector.broadcast %69 : vector<1x512xf32> to vector<4x512xf32>
    %71 = arith.mulf %68, %70 : vector<4x512xf32>
    %72 = vector.extract_strided_slice %8 {offsets = [0, 8], sizes = [4, 1], strides = [1, 1]} : vector<4x9xf32> to vector<4x1xf32>
    %73 = vector.broadcast %72 : vector<4x1xf32> to vector<4x512xf32>
    %74 = arith.mulf %71, %73 : vector<4x512xf32>
    %75 = arith.addf %67, %74 : vector<4x512xf32>
    %c0_17 = arith.constant 0 : index
    %c0_18 = arith.constant 0 : index
    %76 = vector.load %arg5[%c0_17, %c0_18] : memref<4x1xf32, #tpu.memory_space<vmem>>, vector<4x1xf32>
    %77 = vector.broadcast %76 : vector<4x1xf32> to vector<4x512xf32>
    %78 = arith.addf %75, %77 : vector<4x512xf32>
    %c0_19 = arith.constant 0 : index
    %c0_20 = arith.constant 0 : index
    %79 = vector.load %arg6[%c0_19, %c0_20] : memref<16x4xf32, #tpu.memory_space<vmem>>, vector<16x4xf32>
    %cst_21 = arith.constant dense<0.000000e+00> : vector<16x512xf32>
    %80 = tpu.matmul %79, %78, %cst_21 {dimension_numbers = #tpu.dot_dimension_numbers<[1], [0], [0], [1], [0, 0, 1, 1], [], []>} : vector<16x4xf32>, vector<4x512xf32>, vector<16x512xf32> -> vector<16x512xf32>
    %c0_22 = arith.constant 0 : index
    %c0_23 = arith.constant 0 : index
    %81 = vector.load %arg7[%c0_22, %c0_23] : memref<16x1xf32, #tpu.memory_space<vmem>>, vector<16x1xf32>
    %82 = vector.broadcast %81 : vector<16x1xf32> to vector<16x512xf32>
    %83 = arith.addf %80, %82 : vector<16x512xf32>
    %c17_i32_24 = arith.constant 17 : i32
    %84 = tpu.dynamic_rotate %0 by %c17_i32_24 dim 1 : vector<8x512xf32>, i32 -> vector<8x512xf32>
    %c0_25 = arith.constant 0 : index
    %c0_26 = arith.constant 0 : index
    %85 = vector.load %arg1[%c0_25, %c0_26] : memref<9x512xf32, #tpu.memory_space<vmem>>, vector<1x512xf32>
    %86 = vector.broadcast %85 : vector<1x512xf32> to vector<8x512xf32>
    %87 = arith.mulf %84, %86 : vector<8x512xf32>
    %c16_i32_27 = arith.constant 16 : i32
    %88 = tpu.dynamic_rotate %0 by %c16_i32_27 dim 1 : vector<8x512xf32>, i32 -> vector<8x512xf32>
    %c1_28 = arith.constant 1 : index
    %c0_29 = arith.constant 0 : index
    %89 = vector.load %arg1[%c1_28, %c0_29] : memref<9x512xf32, #tpu.memory_space<vmem>>, vector<1x512xf32>
    %90 = vector.broadcast %89 : vector<1x512xf32> to vector<8x512xf32>
    %91 = arith.mulf %88, %90 : vector<8x512xf32>
    %92 = arith.addf %87, %91 : vector<8x512xf32>
    %c15_i32_30 = arith.constant 15 : i32
    %93 = tpu.dynamic_rotate %0 by %c15_i32_30 dim 1 : vector<8x512xf32>, i32 -> vector<8x512xf32>
    %c2_31 = arith.constant 2 : index
    %c0_32 = arith.constant 0 : index
    %94 = vector.load %arg1[%c2_31, %c0_32] : memref<9x512xf32, #tpu.memory_space<vmem>>, vector<1x512xf32>
    %95 = vector.broadcast %94 : vector<1x512xf32> to vector<8x512xf32>
    %96 = arith.mulf %93, %95 : vector<8x512xf32>
    %97 = arith.addf %92, %96 : vector<8x512xf32>
    %c1_i32_33 = arith.constant 1 : i32
    %98 = tpu.dynamic_rotate %0 by %c1_i32_33 dim 1 : vector<8x512xf32>, i32 -> vector<8x512xf32>
    %c3_34 = arith.constant 3 : index
    %c0_35 = arith.constant 0 : index
    %99 = vector.load %arg1[%c3_34, %c0_35] : memref<9x512xf32, #tpu.memory_space<vmem>>, vector<1x512xf32>
    %100 = vector.broadcast %99 : vector<1x512xf32> to vector<8x512xf32>
    %101 = arith.mulf %98, %100 : vector<8x512xf32>
    %102 = arith.addf %97, %101 : vector<8x512xf32>
    %103 = arith.addf %102, %0 : vector<8x512xf32>
    %c511_i32_36 = arith.constant 511 : i32
    %104 = tpu.dynamic_rotate %0 by %c511_i32_36 dim 1 : vector<8x512xf32>, i32 -> vector<8x512xf32>
    %c5_37 = arith.constant 5 : index
    %c0_38 = arith.constant 0 : index
    %105 = vector.load %arg1[%c5_37, %c0_38] : memref<9x512xf32, #tpu.memory_space<vmem>>, vector<1x512xf32>
    %106 = vector.broadcast %105 : vector<1x512xf32> to vector<8x512xf32>
    %107 = arith.mulf %104, %106 : vector<8x512xf32>
    %108 = arith.addf %103, %107 : vector<8x512xf32>
    %c497_i32_39 = arith.constant 497 : i32
    %109 = tpu.dynamic_rotate %0 by %c497_i32_39 dim 1 : vector<8x512xf32>, i32 -> vector<8x512xf32>
    %c6_40 = arith.constant 6 : index
    %c0_41 = arith.constant 0 : index
    %110 = vector.load %arg1[%c6_40, %c0_41] : memref<9x512xf32, #tpu.memory_space<vmem>>, vector<1x512xf32>
    %111 = vector.broadcast %110 : vector<1x512xf32> to vector<8x512xf32>
    %112 = arith.mulf %109, %111 : vector<8x512xf32>
    %113 = arith.addf %108, %112 : vector<8x512xf32>
    %c496_i32_42 = arith.constant 496 : i32
    %114 = tpu.dynamic_rotate %0 by %c496_i32_42 dim 1 : vector<8x512xf32>, i32 -> vector<8x512xf32>
    %c7_43 = arith.constant 7 : index
    %c0_44 = arith.constant 0 : index
    %115 = vector.load %arg1[%c7_43, %c0_44] : memref<9x512xf32, #tpu.memory_space<vmem>>, vector<1x512xf32>
    %116 = vector.broadcast %115 : vector<1x512xf32> to vector<8x512xf32>
    %117 = arith.mulf %114, %116 : vector<8x512xf32>
    %118 = arith.addf %113, %117 : vector<8x512xf32>
    %c495_i32_45 = arith.constant 495 : i32
    %119 = tpu.dynamic_rotate %0 by %c495_i32_45 dim 1 : vector<8x512xf32>, i32 -> vector<8x512xf32>
    %c8_46 = arith.constant 8 : index
    %c0_47 = arith.constant 0 : index
    %120 = vector.load %arg1[%c8_46, %c0_47] : memref<9x512xf32, #tpu.memory_space<vmem>>, vector<1x512xf32>
    %121 = vector.broadcast %120 : vector<1x512xf32> to vector<8x512xf32>
    %122 = arith.mulf %119, %121 : vector<8x512xf32>
    %123 = arith.addf %118, %122 : vector<8x512xf32>
    %cst_48 = arith.constant 0.111111112 : f32
    %124 = vector.broadcast %cst_48 : f32 to vector<8x512xf32>
    %125 = arith.mulf %123, %124 : vector<8x512xf32>
    %cst_49 = arith.constant 0.000000e+00 : f32
    %126 = vector.broadcast %cst_49 : f32 to vector<8x512xf32>
    %127 = arith.maximumf %125, %126 : vector<8x512xf32>
    %c0_50 = arith.constant 0 : index
    %c0_51 = arith.constant 0 : index
    %128 = vector.load %arg18[%c0_50, %c0_51] : memref<24x512xf32, #tpu.memory_space<vmem>>, vector<8x512xf32>
    tpu.vector_store %arg18[%c0_50, %c0_51], %127 {strides = array<i32>} : memref<24x512xf32, #tpu.memory_space<vmem>>, vector<8x512xf32>,
    %cst_52 = arith.constant 0.000000e+00 : f32
    %129 = vector.broadcast %cst_52 : f32 to vector<16x512xf32>
    %130 = arith.maximumf %83, %129 : vector<16x512xf32>
    %c8_53 = arith.constant 8 : index
    %c0_54 = arith.constant 0 : index
    %131 = vector.load %arg18[%c8_53, %c0_54] : memref<24x512xf32, #tpu.memory_space<vmem>>, vector<16x512xf32>
    tpu.vector_store %arg18[%c8_53, %c0_54], %130 {strides = array<i32>} : memref<24x512xf32, #tpu.memory_space<vmem>>, vector<16x512xf32>,
    %c0_55 = arith.constant 0 : index
    %c0_56 = arith.constant 0 : index
    %132 = vector.load %arg18[%c0_55, %c0_56] : memref<24x512xf32, #tpu.memory_space<vmem>>, vector<24x512xf32>
    %c0_57 = arith.constant 0 : index
    %c0_58 = arith.constant 0 : index
    %133 = vector.load %arg8[%c0_57, %c0_58] : memref<6x24xf32, #tpu.memory_space<vmem>>, vector<6x24xf32>
    %cst_59 = arith.constant dense<0.000000e+00> : vector<6x512xf32>
    %134 = tpu.matmul %133, %132, %cst_59 {dimension_numbers = #tpu.dot_dimension_numbers<[1], [0], [0], [1], [0, 0, 1, 1], [], []>} : vector<6x24xf32>, vector<24x512xf32>, vector<6x512xf32> -> vector<6x512xf32>
    %c0_60 = arith.constant 0 : index
    %c0_61 = arith.constant 0 : index
    %135 = vector.load %arg9[%c0_60, %c0_61] : memref<6x1xf32, #tpu.memory_space<vmem>>, vector<6x1xf32>
    %136 = vector.broadcast %135 : vector<6x1xf32> to vector<6x512xf32>
    %137 = arith.addf %134, %136 : vector<6x512xf32>
    %cst_62 = arith.constant 0.000000e+00 : f32
    %138 = vector.broadcast %cst_62 : f32 to vector<6x512xf32>
    %139 = arith.maximumf %137, %138 : vector<6x512xf32>
    %c0_63 = arith.constant 0 : index
    %c0_64 = arith.constant 0 : index
    %140 = vector.load %arg10[%c0_63, %c0_64] : memref<6x9xf32, #tpu.memory_space<vmem>>, vector<6x9xf32>
    %c17_i32_65 = arith.constant 17 : i32
    %141 = tpu.dynamic_rotate %139 by %c17_i32_65 dim 1 : vector<6x512xf32>, i32 -> vector<6x512xf32>
    %c0_66 = arith.constant 0 : index
    %c0_67 = arith.constant 0 : index
    %142 = vector.load %arg1[%c0_66, %c0_67] : memref<9x512xf32, #tpu.memory_space<vmem>>, vector<1x512xf32>
    %143 = vector.broadcast %142 : vector<1x512xf32> to vector<6x512xf32>
    %144 = arith.mulf %141, %143 : vector<6x512xf32>
    %145 = vector.extract_strided_slice %140 {offsets = [0, 0], sizes = [6, 1], strides = [1, 1]} : vector<6x9xf32> to vector<6x1xf32>
    %146 = vector.broadcast %145 : vector<6x1xf32> to vector<6x512xf32>
    %147 = arith.mulf %144, %146 : vector<6x512xf32>
    %c16_i32_68 = arith.constant 16 : i32
    %148 = tpu.dynamic_rotate %139 by %c16_i32_68 dim 1 : vector<6x512xf32>, i32 -> vector<6x512xf32>
    %c1_69 = arith.constant 1 : index
    %c0_70 = arith.constant 0 : index
    %149 = vector.load %arg1[%c1_69, %c0_70] : memref<9x512xf32, #tpu.memory_space<vmem>>, vector<1x512xf32>
    %150 = vector.broadcast %149 : vector<1x512xf32> to vector<6x512xf32>
    %151 = arith.mulf %148, %150 : vector<6x512xf32>
    %152 = vector.extract_strided_slice %140 {offsets = [0, 1], sizes = [6, 1], strides = [1, 1]} : vector<6x9xf32> to vector<6x1xf32>
    %153 = vector.broadcast %152 : vector<6x1xf32> to vector<6x512xf32>
    %154 = arith.mulf %151, %153 : vector<6x512xf32>
    %155 = arith.addf %147, %154 : vector<6x512xf32>
    %c15_i32_71 = arith.constant 15 : i32
    %156 = tpu.dynamic_rotate %139 by %c15_i32_71 dim 1 : vector<6x512xf32>, i32 -> vector<6x512xf32>
    %c2_72 = arith.constant 2 : index
    %c0_73 = arith.constant 0 : index
    %157 = vector.load %arg1[%c2_72, %c0_73] : memref<9x512xf32, #tpu.memory_space<vmem>>, vector<1x512xf32>
    %158 = vector.broadcast %157 : vector<1x512xf32> to vector<6x512xf32>
    %159 = arith.mulf %156, %158 : vector<6x512xf32>
    %160 = vector.extract_strided_slice %140 {offsets = [0, 2], sizes = [6, 1], strides = [1, 1]} : vector<6x9xf32> to vector<6x1xf32>
    %161 = vector.broadcast %160 : vector<6x1xf32> to vector<6x512xf32>
    %162 = arith.mulf %159, %161 : vector<6x512xf32>
    %163 = arith.addf %155, %162 : vector<6x512xf32>
    %c1_i32_74 = arith.constant 1 : i32
    %164 = tpu.dynamic_rotate %139 by %c1_i32_74 dim 1 : vector<6x512xf32>, i32 -> vector<6x512xf32>
    %c3_75 = arith.constant 3 : index
    %c0_76 = arith.constant 0 : index
    %165 = vector.load %arg1[%c3_75, %c0_76] : memref<9x512xf32, #tpu.memory_space<vmem>>, vector<1x512xf32>
    %166 = vector.broadcast %165 : vector<1x512xf32> to vector<6x512xf32>
    %167 = arith.mulf %164, %166 : vector<6x512xf32>
    %168 = vector.extract_strided_slice %140 {offsets = [0, 3], sizes = [6, 1], strides = [1, 1]} : vector<6x9xf32> to vector<6x1xf32>
    %169 = vector.broadcast %168 : vector<6x1xf32> to vector<6x512xf32>
    %170 = arith.mulf %167, %169 : vector<6x512xf32>
    %171 = arith.addf %163, %170 : vector<6x512xf32>
    %172 = vector.extract_strided_slice %140 {offsets = [0, 4], sizes = [6, 1], strides = [1, 1]} : vector<6x9xf32> to vector<6x1xf32>
    %173 = vector.broadcast %172 : vector<6x1xf32> to vector<6x512xf32>
    %174 = arith.mulf %139, %173 : vector<6x512xf32>
    %175 = arith.addf %171, %174 : vector<6x512xf32>
    %c511_i32_77 = arith.constant 511 : i32
    %176 = tpu.dynamic_rotate %139 by %c511_i32_77 dim 1 : vector<6x512xf32>, i32 -> vector<6x512xf32>
    %c5_78 = arith.constant 5 : index
    %c0_79 = arith.constant 0 : index
    %177 = vector.load %arg1[%c5_78, %c0_79] : memref<9x512xf32, #tpu.memory_space<vmem>>, vector<1x512xf32>
    %178 = vector.broadcast %177 : vector<1x512xf32> to vector<6x512xf32>
    %179 = arith.mulf %176, %178 : vector<6x512xf32>
    %180 = vector.extract_strided_slice %140 {offsets = [0, 5], sizes = [6, 1], strides = [1, 1]} : vector<6x9xf32> to vector<6x1xf32>
    %181 = vector.broadcast %180 : vector<6x1xf32> to vector<6x512xf32>
    %182 = arith.mulf %179, %181 : vector<6x512xf32>
    %183 = arith.addf %175, %182 : vector<6x512xf32>
    %c497_i32_80 = arith.constant 497 : i32
    %184 = tpu.dynamic_rotate %139 by %c497_i32_80 dim 1 : vector<6x512xf32>, i32 -> vector<6x512xf32>
    %c6_81 = arith.constant 6 : index
    %c0_82 = arith.constant 0 : index
    %185 = vector.load %arg1[%c6_81, %c0_82] : memref<9x512xf32, #tpu.memory_space<vmem>>, vector<1x512xf32>
    %186 = vector.broadcast %185 : vector<1x512xf32> to vector<6x512xf32>
    %187 = arith.mulf %184, %186 : vector<6x512xf32>
    %188 = vector.extract_strided_slice %140 {offsets = [0, 6], sizes = [6, 1], strides = [1, 1]} : vector<6x9xf32> to vector<6x1xf32>
    %189 = vector.broadcast %188 : vector<6x1xf32> to vector<6x512xf32>
    %190 = arith.mulf %187, %189 : vector<6x512xf32>
    %191 = arith.addf %183, %190 : vector<6x512xf32>
    %c496_i32_83 = arith.constant 496 : i32
    %192 = tpu.dynamic_rotate %139 by %c496_i32_83 dim 1 : vector<6x512xf32>, i32 -> vector<6x512xf32>
    %c7_84 = arith.constant 7 : index
    %c0_85 = arith.constant 0 : index
    %193 = vector.load %arg1[%c7_84, %c0_85] : memref<9x512xf32, #tpu.memory_space<vmem>>, vector<1x512xf32>
    %194 = vector.broadcast %193 : vector<1x512xf32> to vector<6x512xf32>
    %195 = arith.mulf %192, %194 : vector<6x512xf32>
    %196 = vector.extract_strided_slice %140 {offsets = [0, 7], sizes = [6, 1], strides = [1, 1]} : vector<6x9xf32> to vector<6x1xf32>
    %197 = vector.broadcast %196 : vector<6x1xf32> to vector<6x512xf32>
    %198 = arith.mulf %195, %197 : vector<6x512xf32>
    %199 = arith.addf %191, %198 : vector<6x512xf32>
    %c495_i32_86 = arith.constant 495 : i32
    %200 = tpu.dynamic_rotate %139 by %c495_i32_86 dim 1 : vector<6x512xf32>, i32 -> vector<6x512xf32>
    %c8_87 = arith.constant 8 : index
    %c0_88 = arith.constant 0 : index
    %201 = vector.load %arg1[%c8_87, %c0_88] : memref<9x512xf32, #tpu.memory_space<vmem>>, vector<1x512xf32>
    %202 = vector.broadcast %201 : vector<1x512xf32> to vector<6x512xf32>
    %203 = arith.mulf %200, %202 : vector<6x512xf32>
    %204 = vector.extract_strided_slice %140 {offsets = [0, 8], sizes = [6, 1], strides = [1, 1]} : vector<6x9xf32> to vector<6x1xf32>
    %205 = vector.broadcast %204 : vector<6x1xf32> to vector<6x512xf32>
    %206 = arith.mulf %203, %205 : vector<6x512xf32>
    %207 = arith.addf %199, %206 : vector<6x512xf32>
    %c0_89 = arith.constant 0 : index
    %c0_90 = arith.constant 0 : index
    %208 = vector.load %arg11[%c0_89, %c0_90] : memref<6x1xf32, #tpu.memory_space<vmem>>, vector<6x1xf32>
    %209 = vector.broadcast %208 : vector<6x1xf32> to vector<6x512xf32>
    %210 = arith.addf %207, %209 : vector<6x512xf32>
    %c0_91 = arith.constant 0 : index
    %c0_92 = arith.constant 0 : index
    %211 = vector.load %arg12[%c0_91, %c0_92] : memref<24x6xf32, #tpu.memory_space<vmem>>, vector<24x6xf32>
    %cst_93 = arith.constant dense<0.000000e+00> : vector<24x512xf32>
    %212 = tpu.matmul %211, %210, %cst_93 {dimension_numbers = #tpu.dot_dimension_numbers<[1], [0], [0], [1], [0, 0, 1, 1], [], []>} : vector<24x6xf32>, vector<6x512xf32>, vector<24x512xf32> -> vector<24x512xf32>
    %c0_94 = arith.constant 0 : index
    %c0_95 = arith.constant 0 : index
    %213 = vector.load %arg13[%c0_94, %c0_95] : memref<24x1xf32, #tpu.memory_space<vmem>>, vector<24x1xf32>
    %214 = vector.broadcast %213 : vector<24x1xf32> to vector<24x512xf32>
    %215 = arith.addf %212, %214 : vector<24x512xf32>
    %216 = arith.addf %132, %215 : vector<24x512xf32>
    %cst_96 = arith.constant 0.000000e+00 : f32
    %217 = vector.broadcast %cst_96 : f32 to vector<24x512xf32>
    %218 = arith.maximumf %216, %217 : vector<24x512xf32>
    %c0_97 = arith.constant 0 : index
    %c0_98 = arith.constant 0 : index
    %219 = vector.load %arg14[%c0_97, %c0_98] : memref<24x1xf32, #tpu.memory_space<vmem>>, vector<24x1xf32>
    %220 = vector.broadcast %219 : vector<24x1xf32> to vector<24x512xf32>
    %221 = arith.mulf %218, %220 : vector<24x512xf32>
    %c0_99 = arith.constant 0 : index
    %c0_100 = arith.constant 0 : index
    %222 = vector.load %arg15[%c0_99, %c0_100] : memref<24x1xf32, #tpu.memory_space<vmem>>, vector<24x1xf32>
    %223 = vector.broadcast %222 : vector<24x1xf32> to vector<24x512xf32>
    %224 = arith.addf %221, %223 : vector<24x512xf32>
    %cst_101 = arith.constant 0.000000e+00 : f32
    %225 = vector.broadcast %cst_101 : f32 to vector<24x512xf32>
    %226 = arith.maximumf %224, %225 : vector<24x512xf32>
    %c511_i32_102 = arith.constant 511 : i32
    %227 = tpu.dynamic_rotate %226 by %c511_i32_102 dim 1 : vector<24x512xf32>, i32 -> vector<24x512xf32>
    %228 = arith.maximumf %226, %227 : vector<24x512xf32>
    %c496_i32_103 = arith.constant 496 : i32
    %229 = tpu.dynamic_rotate %228 by %c496_i32_103 dim 1 : vector<24x512xf32>, i32 -> vector<24x512xf32>
    %230 = arith.maximumf %228, %229 : vector<24x512xf32>
    %c0_104 = arith.constant 0 : index
    %c0_105 = arith.constant 0 : index
    %231 = vector.load %arg16[%c0_104, %c0_105] : memref<512x128xf32, #tpu.memory_space<vmem>>, vector<512x128xf32>
    %cst_106 = arith.constant dense<0.000000e+00> : vector<24x128xf32>
    %232 = tpu.matmul %230, %231, %cst_106 {dimension_numbers = #tpu.dot_dimension_numbers<[1], [0], [0], [1], [0, 0, 1, 1], [], []>} : vector<24x512xf32>, vector<512x128xf32>, vector<24x128xf32> -> vector<24x128xf32>
    %c0_107 = arith.constant 0 : index
    %c0_108 = arith.constant 0 : index
    %233 = vector.load %arg17[%c0_107, %c0_108] : memref<24x128xf32, #tpu.memory_space<vmem>>, vector<24x128xf32>
    tpu.vector_store %arg17[%c0_107, %c0_108], %232 {strides = array<i32>} : memref<24x128xf32, #tpu.memory_space<vmem>>, vector<24x128xf32>,
    return
  }
}

</mosaic_0001>

<llo_original>
// kernel: shufflenet_block_forward.1
$region0: #{shufflenet_block_forward.1}
  #allocation0 [shape = 'u32[]', space=smem, size = 0x4, offset = 0x4, fixed_abs, tag = 'smem constant byte address 0x4 - core index']
  #allocation1 [shape = 'u32[72,128]{1,0:T(1,128)}', space=vmem, size = 0x9000, scoped, tag = 'internal scratch']
  #allocation2 [shape = 'f32[24,512]{1,0:T(8,128)}', space=vmem, size = 0xc000, scoped, tag = 'scratch operand']
  %s0 = inlined_call_operand.vmem [shape: f32[8,512], index: 0, kind: input, shape index: {}]
  %s1 = inlined_call_operand.vmem [shape: f32[9,512], index: 1, kind: input, shape index: {}]
  %s2 = inlined_call_operand.vmem [shape: f32[4,8], index: 2, kind: input, shape index: {}]
  %s3 = inlined_call_operand.vmem [shape: f32[4,1], index: 3, kind: input, shape index: {}]
  %s4 = inlined_call_operand.vmem [shape: f32[4,9], index: 4, kind: input, shape index: {}]
  %s5 = inlined_call_operand.vmem [shape: f32[4,1], index: 5, kind: input, shape index: {}]
  %s6 = inlined_call_operand.vmem [shape: f32[16,4], index: 6, kind: input, shape index: {}]
  %s7 = inlined_call_operand.vmem [shape: f32[16,1], index: 7, kind: input, shape index: {}]
  %s8 = inlined_call_operand.vmem [shape: f32[6,24], index: 8, kind: input, shape index: {}]
  %s9 = inlined_call_operand.vmem [shape: f32[6,1], index: 9, kind: input, shape index: {}]
  %s10 = inlined_call_operand.vmem [shape: f32[6,9], index: 10, kind: input, shape index: {}]
  %s11 = inlined_call_operand.vmem [shape: f32[6,1], index: 11, kind: input, shape index: {}]
  %s12 = inlined_call_operand.vmem [shape: f32[24,6], index: 12, kind: input, shape index: {}]
  %s13 = inlined_call_operand.vmem [shape: f32[24,1], index: 13, kind: input, shape index: {}]
  %s14 = inlined_call_operand.vmem [shape: f32[24,1], index: 14, kind: input, shape index: {}]
  %s15 = inlined_call_operand.vmem [shape: f32[24,1], index: 15, kind: input, shape index: {}]
  %s16 = inlined_call_operand.vmem [shape: f32[512,128], index: 16, kind: input, shape index: {}]
  %s17 = inlined_call_operand.vmem [shape: f32[24,128], index: 17, kind: output, shape index: {}]
  %s18 = sld [smem:[#allocation0]]
  $region78: #{shufflenet_block_forward.1} parent=0
    _
  %s20 = ssub.s32 1, %s18
  %s21 = scalar_select 0, %s20, %s18
  // Predicated region
  $region2: #{shufflenet_block_forward.1} parent=0 // pred_check
    _
  $region3: #{shufflenet_block_forward.1} parent=0 // pred_check_branch
    %23 = sbr.rel (0) target = $region5
  $region4: #{shufflenet_block_forward.1} parent=0 // pred_region
    _
  $region5: #{shufflenet_block_forward.1} parent=0 // pred_fallthru
    _
  // Predicated region
  $region6: #{shufflenet_block_forward.1} parent=0 // pred_check
    _
  $region7: #{shufflenet_block_forward.1} parent=0 // pred_check_branch
    %25 = sbr.rel (0) target = $region9
  $region8: #{shufflenet_block_forward.1} parent=0 // pred_region
    _
  $region9: #{shufflenet_block_forward.1} parent=0 // pred_fallthru
    _
  // Predicated region
  $region10: #{shufflenet_block_forward.1} parent=0 // pred_check
    _
  $region11: #{shufflenet_block_forward.1} parent=0 // pred_check_branch
    %27 = sbr.rel (0) target = $region13
  $region12: #{shufflenet_block_forward.1} parent=0 // pred_region
    _
  $region13: #{shufflenet_block_forward.1} parent=0 // pred_fallthru
    _
  // Predicated region
  $region14: #{shufflenet_block_forward.1} parent=0 // pred_check
    _
  $region15: #{shufflenet_block_forward.1} parent=0 // pred_check_branch
    %29 = sbr.rel (0) target = $region17
  $region16: #{shufflenet_block_forward.1} parent=0 // pred_region
    _
  $region17: #{shufflenet_block_forward.1} parent=0 // pred_fallthru
    _
  // Predicated region
  $region18: #{shufflenet_block_forward.1} parent=0 // pred_check
    _
  $region19: #{shufflenet_block_forward.1} parent=0 // pred_check_branch
    %31 = sbr.rel (0) target = $region21
  $region20: #{shufflenet_block_forward.1} parent=0 // pred_region
    _
  $region21: #{shufflenet_block_forward.1} parent=0 // pred_fallthru
    _
  // Predicated region
  $region22: #{shufflenet_block_forward.1} parent=0 // pred_check
    _
  $region23: #{shufflenet_block_forward.1} parent=0 // pred_check_branch
    %33 = sbr.rel (0) target = $region25
  $region24: #{shufflenet_block_forward.1} parent=0 // pred_region
    _
  $region25: #{shufflenet_block_forward.1} parent=0 // pred_fallthru
    _
  // Predicated region
  $region26: #{shufflenet_block_forward.1} parent=0 // pred_check
    _
  $region27: #{shufflenet_block_forward.1} parent=0 // pred_check_branch
    %35 = sbr.rel (0) target = $region29
  $region28: #{shufflenet_block_forward.1} parent=0 // pred_region
    _
  $region29: #{shufflenet_block_forward.1} parent=0 // pred_fallthru
    _
  // Predicated region
  $region30: #{shufflenet_block_forward.1} parent=0 // pred_check
    _
  $region31: #{shufflenet_block_forward.1} parent=0 // pred_check_branch
    %37 = sbr.rel (0) target = $region33
  $region32: #{shufflenet_block_forward.1} parent=0 // pred_region
    _
  $region33: #{shufflenet_block_forward.1} parent=0 // pred_fallthru
    _
  // Predicated region
  $region34: #{shufflenet_block_forward.1} parent=0 // pred_check
    _
  $region35: #{shufflenet_block_forward.1} parent=0 // pred_check_branch
    %39 = sbr.rel (0) target = $region37
  $region36: #{shufflenet_block_forward.1} parent=0 // pred_region
    _
  $region37: #{shufflenet_block_forward.1} parent=0 // pred_fallthru
    _
  // Predicated region
  $region38: #{shufflenet_block_forward.1} parent=0 // pred_check
    _
  $region39: #{shufflenet_block_forward.1} parent=0 // pred_check_branch
    %41 = sbr.rel (0) target = $region41
  $region40: #{shufflenet_block_forward.1} parent=0 // pred_region
    _
  $region41: #{shufflenet_block_forward.1} parent=0 // pred_fallthru
    _
  // Predicated region
  $region42: #{shufflenet_block_forward.1} parent=0 // pred_check
    _
  $region43: #{shufflenet_block_forward.1} parent=0 // pred_check_branch
    %43 = sbr.rel (0) target = $region45
  $region44: #{shufflenet_block_forward.1} parent=0 // pred_region
    _
  $region45: #{shufflenet_block_forward.1} parent=0 // pred_fallthru
    _
  // Predicated region
  $region46: #{shufflenet_block_forward.1} parent=0 // pred_check
    _
  $region47: #{shufflenet_block_forward.1} parent=0 // pred_check_branch
    %45 = sbr.rel (0) target = $region49
  $region48: #{shufflenet_block_forward.1} parent=0 // pred_region
    _
  $region49: #{shufflenet_block_forward.1} parent=0 // pred_fallthru
    _
  // Predicated region
  $region50: #{shufflenet_block_forward.1} parent=0 // pred_check
    _
  $region51: #{shufflenet_block_forward.1} parent=0 // pred_check_branch
    %47 = sbr.rel (0) target = $region53
  $region52: #{shufflenet_block_forward.1} parent=0 // pred_region
    _
  $region53: #{shufflenet_block_forward.1} parent=0 // pred_fallthru
    _
  // Predicated region
  $region54: #{shufflenet_block_forward.1} parent=0 // pred_check
    _
  $region55: #{shufflenet_block_forward.1} parent=0 // pred_check_branch
    %49 = sbr.rel (0) target = $region57
  $region56: #{shufflenet_block_forward.1} parent=0 // pred_region
    _
  $region57: #{shufflenet_block_forward.1} parent=0 // pred_fallthru
    _
  // Predicated region
  $region58: #{shufflenet_block_forward.1} parent=0 // pred_check
    _
  $region59: #{shufflenet_block_forward.1} parent=0 // pred_check_branch
    %51 = sbr.rel (0) target = $region61
  $region60: #{shufflenet_block_forward.1} parent=0 // pred_region
    _
  $region61: #{shufflenet_block_forward.1} parent=0 // pred_fallthru
    _
  // Predicated region
  $region62: #{shufflenet_block_forward.1} parent=0 // pred_check
    _
  $region63: #{shufflenet_block_forward.1} parent=0 // pred_check_branch
    %53 = sbr.rel (0) target = $region65
  $region64: #{shufflenet_block_forward.1} parent=0 // pred_region
    _
  $region65: #{shufflenet_block_forward.1} parent=0 // pred_fallthru
    _
  // Predicated region
  $region66: #{shufflenet_block_forward.1} parent=0 // pred_check
    _
  $region67: #{shufflenet_block_forward.1} parent=0 // pred_check_branch
    %55 = sbr.rel (0) target = $region69
  $region68: #{shufflenet_block_forward.1} parent=0 // pred_region
    _
  $region69: #{shufflenet_block_forward.1} parent=0 // pred_fallthru
    _
  %v56 = vld [vmem:[%s0] sm:$0xff]
  %v57 = vld [vmem:[%s0 + $0x8] sm:$0xff]
  %v58 = vld [vmem:[%s0 + $0x10] sm:$0xff]
  %v59 = vld [vmem:[%s0 + $0x18] sm:$0xff]
  %v60 = vld [vmem:[%s2] sm:$0xf]
  %v61 = vld [vmem:[%s3] sm:$0xf]
  %63 = vset.pattern.permute.xlu0 0
  %64 = vperm.xlu0 %63, %v61
  %v65 = vpop.permute.xlu0 %64
  %vm67 = vcmask 64512
  %v69 = vsel %vm67, %v60, 0
  %71 = vmatpush.msra.mxu0 0.0
  %72 = vmatpush.msra.mxu0 0.0
  %73 = vmatpush.msra.mxu0 0.0
  %74 = vmatpush.msra.mxu0 0.0
  %75 = vmatpush.msra.mxu0 0.0
  %76 = vmatpush.msra.mxu0 0.0
  %77 = vmatpush.msra.mxu0 0.0
  %78 = vmatpush.msra.mxu0 0.0
  %79 = vmatpush.msra.mxu0 0.0
  %80 = vmatpush.msra.mxu0 0.0
  %81 = vmatpush.msra.mxu0 0.0
  %82 = vmatpush.msra.mxu0 0.0
  %83 = vmatpush.msra.mxu0 0.0
  %84 = vmatpush.msra.mxu0 0.0
  %85 = vmatpush.msra.mxu0 0.0
  %86 = vmatpush.msra.mxu0 %v56
  %87 = vmatmul.f32.gmra.mxu0 %v69
  %v88 = vpop.f32.mrf.mxu0
  %v89 = vadd.f32 %v65, %v88
  %90 = vdwg.mxu0
  %91 = vmatpush.msra.mxu0 0.0
  %92 = vmatpush.msra.mxu0 0.0
  %93 = vmatpush.msra.mxu0 0.0
  %94 = vmatpush.msra.mxu0 0.0
  %95 = vmatpush.msra.mxu0 0.0
  %96 = vmatpush.msra.mxu0 0.0
  %97 = vmatpush.msra.mxu0 0.0
  %98 = vmatpush.msra.mxu0 0.0
  %99 = vmatpush.msra.mxu0 0.0
  %100 = vmatpush.msra.mxu0 0.0
  %101 = vmatpush.msra.mxu0 0.0
  %102 = vmatpush.msra.mxu0 0.0
  %103 = vmatpush.msra.mxu0 0.0
  %104 = vmatpush.msra.mxu0 0.0
  %105 = vmatpush.msra.mxu0 0.0
  %106 = vmatpush.msra.mxu0 %v57
  %107 = vmatmul.f32.gmra.mxu0 %v69
  %v108 = vpop.f32.mrf.mxu0
  %v109 = vadd.f32 %v65, %v108
  %110 = vdwg.mxu0
  %111 = vmatpush.msra.mxu0 0.0
  %112 = vmatpush.msra.mxu0 0.0
  %113 = vmatpush.msra.mxu0 0.0
  %114 = vmatpush.msra.mxu0 0.0
  %115 = vmatpush.msra.mxu0 0.0
  %116 = vmatpush.msra.mxu0 0.0
  %117 = vmatpush.msra.mxu0 0.0
  %118 = vmatpush.msra.mxu0 0.0
  %119 = vmatpush.msra.mxu0 0.0
  %120 = vmatpush.msra.mxu0 0.0
  %121 = vmatpush.msra.mxu0 0.0
  %122 = vmatpush.msra.mxu0 0.0
  %123 = vmatpush.msra.mxu0 0.0
  %124 = vmatpush.msra.mxu0 0.0
  %125 = vmatpush.msra.mxu0 0.0
  %126 = vmatpush.msra.mxu0 %v58
  %127 = vmatmul.f32.gmra.mxu0 %v69
  %v128 = vpop.f32.mrf.mxu0
  %v129 = vadd.f32 %v65, %v128
  %130 = vdwg.mxu0
  %131 = vmatpush.msra.mxu0 0.0
  %132 = vmatpush.msra.mxu0 0.0
  %133 = vmatpush.msra.mxu0 0.0
  %134 = vmatpush.msra.mxu0 0.0
  %135 = vmatpush.msra.mxu0 0.0
  %136 = vmatpush.msra.mxu0 0.0
  %137 = vmatpush.msra.mxu0 0.0
  %138 = vmatpush.msra.mxu0 0.0
  %139 = vmatpush.msra.mxu0 0.0
  %140 = vmatpush.msra.mxu0 0.0
  %141 = vmatpush.msra.mxu0 0.0
  %142 = vmatpush.msra.mxu0 0.0
  %143 = vmatpush.msra.mxu0 0.0
  %144 = vmatpush.msra.mxu0 0.0
  %145 = vmatpush.msra.mxu0 0.0
  %146 = vmatpush.msra.mxu0 %v59
  %147 = vmatmul.f32.gmra.mxu0 %v69
  %v148 = vpop.f32.mrf.mxu0
  %v149 = vadd.f32 %v65, %v148
  %150 = vdwg.mxu0
  %v151 = vmax.f32 %v89, 0.0
  %v152 = vmax.f32 %v109, 0.0
  %v153 = vmax.f32 %v129, 0.0
  %v154 = vmax.f32 %v149, 0.0
  %v155 = vld [vmem:[%s4] sm:$0xf]
  %156 = vrot.lane.b32.xlu0 %v151, 17
  %v157 = vpop.permute.xlu0 %156
  %158 = vrot.lane.b32.xlu0 %v152, 17
  %v159 = vpop.permute.xlu0 %158
  %160 = vrot.lane.b32.xlu0 %v153, 17
  %v161 = vpop.permute.xlu0 %160
  %162 = vrot.lane.b32.xlu0 %v154, 17
  %v163 = vpop.permute.xlu0 %162
  %v164 = vlaneseq
  %v165 = vand.u32 %v164, 127
  %vm166 = vcmp.lt.s32.totalorder %v165, 17
  %v167 = vsel %vm166, %v161, %v163
  %v168 = vsel %vm166, %v159, %v161
  %v169 = vsel %vm166, %v157, %v159
  %v170 = vsel %vm166, %v163, %v157
  %v171 = vld [vmem:[%s1] ss:$8 sm:$0xf]
  %v173 = vperm.slane %v171, 0
  %v174 = vperm.slane %v171, 1
  %v175 = vperm.slane %v171, 2
  %v176 = vperm.slane %v171, 3
  %v181 = vmul.f32 %v170, %v173
  %v182 = vmul.f32 %v169, %v174
  %v183 = vmul.f32 %v168, %v175
  %v184 = vmul.f32 %v167, %v176
  %186 = vset.pattern.permute.xlu0 0
  %187 = vperm.xlu0 %186, %v155
  %v188 = vpop.permute.xlu0 %187
  %v190 = vmul.f32 %v181, %v188
  %v191 = vmul.f32 %v182, %v188
  %v192 = vmul.f32 %v183, %v188
  %v193 = vmul.f32 %v184, %v188
  %194 = vrot.lane.b32.xlu0 %v151, 16
  %v195 = vpop.permute.xlu0 %194
  %196 = vrot.lane.b32.xlu0 %v152, 16
  %v197 = vpop.permute.xlu0 %196
  %198 = vrot.lane.b32.xlu0 %v153, 16
  %v199 = vpop.permute.xlu0 %198
  %200 = vrot.lane.b32.xlu0 %v154, 16
  %v201 = vpop.permute.xlu0 %200
  %vm202 = vcmp.lt.s32.totalorder %v165, 16
  %v203 = vsel %vm202, %v199, %v201
  %v204 = vsel %vm202, %v197, %v199
  %v205 = vsel %vm202, %v195, %v197
  %v206 = vsel %vm202, %v201, %v195
  %s207 = scalar_lea.vmem %s1, 1
  %v208 = vld [vmem:[%s207] ss:$8 sm:$0xf]
  %v210 = vperm.slane %v208, 0
  %v211 = vperm.slane %v208, 1
  %v212 = vperm.slane %v208, 2
  %v213 = vperm.slane %v208, 3
  %v218 = vmul.f32 %v206, %v210
  %v219 = vmul.f32 %v205, %v211
  %v220 = vmul.f32 %v204, %v212
  %v221 = vmul.f32 %v203, %v213
  %222 = vset.pattern.permute.xlu0 1
  %223 = vperm.xlu0 %222, %v155
  %v224 = vpop.permute.xlu0 %223
  %v226 = vmul.f32 %v218, %v224
  %v227 = vmul.f32 %v219, %v224
  %v228 = vmul.f32 %v220, %v224
  %v229 = vmul.f32 %v221, %v224
  %v230 = vadd.f32 %v190, %v226
  %v231 = vadd.f32 %v191, %v227
  %v232 = vadd.f32 %v192, %v228
  %v233 = vadd.f32 %v193, %v229
  %234 = vrot.lane.b32.xlu0 %v151, 15
  %v235 = vpop.permute.xlu0 %234
  %236 = vrot.lane.b32.xlu0 %v152, 15
  %v237 = vpop.permute.xlu0 %236
  %238 = vrot.lane.b32.xlu0 %v153, 15
  %v239 = vpop.permute.xlu0 %238
  %240 = vrot.lane.b32.xlu0 %v154, 15
  %v241 = vpop.permute.xlu0 %240
  %vm242 = vcmp.lt.s32.totalorder %v165, 15
  %v243 = vsel %vm242, %v239, %v241
  %v244 = vsel %vm242, %v237, %v239
  %v245 = vsel %vm242, %v235, %v237
  %v246 = vsel %vm242, %v241, %v235
  %s247 = scalar_lea.vmem %s1, 2
  %v248 = vld [vmem:[%s247] ss:$8 sm:$0xf]
  %v250 = vperm.slane %v248, 0
  %v251 = vperm.slane %v248, 1
  %v252 = vperm.slane %v248, 2
  %v253 = vperm.slane %v248, 3
  %v258 = vmul.f32 %v246, %v250
  %v259 = vmul.f32 %v245, %v251
  %v260 = vmul.f32 %v244, %v252
  %v261 = vmul.f32 %v243, %v253
  %262 = vset.pattern.permute.xlu0 2
  %263 = vperm.xlu0 %262, %v155
  %v264 = vpop.permute.xlu0 %263
  %v266 = vmul.f32 %v258, %v264
  %v267 = vmul.f32 %v259, %v264
  %v268 = vmul.f32 %v260, %v264
  %v269 = vmul.f32 %v261, %v264
  %v270 = vadd.f32 %v230, %v266
  %v271 = vadd.f32 %v231, %v267
  %v272 = vadd.f32 %v232, %v268
  %v273 = vadd.f32 %v233, %v269
  %274 = vrot.lane.b32.xlu0 %v151, 1
  %v275 = vpop.permute.xlu0 %274
  %276 = vrot.lane.b32.xlu0 %v152, 1
  %v277 = vpop.permute.xlu0 %276
  %278 = vrot.lane.b32.xlu0 %v153, 1
  %v279 = vpop.permute.xlu0 %278
  %280 = vrot.lane.b32.xlu0 %v154, 1
  %v281 = vpop.permute.xlu0 %280
  %vm282 = vcmp.lt.s32.totalorder %v165, 1
  %v283 = vsel %vm282, %v279, %v281
  %v284 = vsel %vm282, %v277, %v279
  %v285 = vsel %vm282, %v275, %v277
  %v286 = vsel %vm282, %v281, %v275
  %s287 = scalar_lea.vmem %s1, 3
  %v288 = vld [vmem:[%s287] ss:$8 sm:$0xf]
  %v290 = vperm.slane %v288, 0
  %v291 = vperm.slane %v288, 1
  %v292 = vperm.slane %v288, 2
  %v293 = vperm.slane %v288, 3
  %v298 = vmul.f32 %v286, %v290
  %v299 = vmul.f32 %v285, %v291
  %v300 = vmul.f32 %v284, %v292
  %v301 = vmul.f32 %v283, %v293
  %302 = vset.pattern.permute.xlu0 3
  %303 = vperm.xlu0 %302, %v155
  %v304 = vpop.permute.xlu0 %303
  %v306 = vmul.f32 %v298, %v304
  %v307 = vmul.f32 %v299, %v304
  %v308 = vmul.f32 %v300, %v304
  %v309 = vmul.f32 %v301, %v304
  %v310 = vadd.f32 %v270, %v306
  %v311 = vadd.f32 %v271, %v307
  %v312 = vadd.f32 %v272, %v308
  %v313 = vadd.f32 %v273, %v309
  %314 = vset.pattern.permute.xlu0 4
  %315 = vperm.xlu0 %314, %v155
  %v316 = vpop.permute.xlu0 %315
  %v318 = vmul.f32 %v151, %v316
  %v319 = vmul.f32 %v152, %v316
  %v320 = vmul.f32 %v153, %v316
  %v321 = vmul.f32 %v154, %v316
  %v322 = vadd.f32 %v310, %v318
  %v323 = vadd.f32 %v311, %v319
  %v324 = vadd.f32 %v312, %v320
  %v325 = vadd.f32 %v313, %v321
  %326 = vrot.lane.b32.xlu0 %v151, 127
  %v327 = vpop.permute.xlu0 %326
  %328 = vrot.lane.b32.xlu0 %v152, 127
  %v329 = vpop.permute.xlu0 %328
  %330 = vrot.lane.b32.xlu0 %v153, 127
  %v331 = vpop.permute.xlu0 %330
  %332 = vrot.lane.b32.xlu0 %v154, 127
  %v333 = vpop.permute.xlu0 %332
  %vm334 = vcmp.lt.s32.totalorder %v165, 127
  %v335 = vsel %vm334, %v331, %v333
  %v336 = vsel %vm334, %v329, %v331
  %v337 = vsel %vm334, %v327, %v329
  %v338 = vsel %vm334, %v333, %v327
  %s339 = scalar_lea.vmem %s1, 5
  %v340 = vld [vmem:[%s339] ss:$8 sm:$0xf]
  %v342 = vperm.slane %v340, 0
  %v343 = vperm.slane %v340, 1
  %v344 = vperm.slane %v340, 2
  %v345 = vperm.slane %v340, 3
  %v350 = vmul.f32 %v337, %v342
  %v351 = vmul.f32 %v336, %v343
  %v352 = vmul.f32 %v335, %v344
  %v353 = vmul.f32 %v338, %v345
  %354 = vset.pattern.permute.xlu0 5
  %355 = vperm.xlu0 %354, %v155
  %v356 = vpop.permute.xlu0 %355
  %v358 = vmul.f32 %v350, %v356
  %v359 = vmul.f32 %v351, %v356
  %v360 = vmul.f32 %v352, %v356
  %v361 = vmul.f32 %v353, %v356
  %v362 = vadd.f32 %v322, %v358
  %v363 = vadd.f32 %v323, %v359
  %v364 = vadd.f32 %v324, %v360
  %v365 = vadd.f32 %v325, %v361
  %366 = vrot.lane.b32.xlu0 %v151, 113
  %v367 = vpop.permute.xlu0 %366
  %368 = vrot.lane.b32.xlu0 %v152, 113
  %v369 = vpop.permute.xlu0 %368
  %370 = vrot.lane.b32.xlu0 %v153, 113
  %v371 = vpop.permute.xlu0 %370
  %372 = vrot.lane.b32.xlu0 %v154, 113
  %v373 = vpop.permute.xlu0 %372
  %vm374 = vcmp.lt.s32.totalorder %v165, 113
  %v375 = vsel %vm374, %v371, %v373
  %v376 = vsel %vm374, %v369, %v371
  %v377 = vsel %vm374, %v367, %v369
  %v378 = vsel %vm374, %v373, %v367
  %s379 = scalar_lea.vmem %s1, 6
  %v380 = vld [vmem:[%s379] ss:$8 sm:$0xf]
  %v382 = vperm.slane %v380, 0
  %v383 = vperm.slane %v380, 1
  %v384 = vperm.slane %v380, 2
  %v385 = vperm.slane %v380, 3
  %v390 = vmul.f32 %v377, %v382
  %v391 = vmul.f32 %v376, %v383
  %v392 = vmul.f32 %v375, %v384
  %v393 = vmul.f32 %v378, %v385
  %394 = vset.pattern.permute.xlu0 6
  %395 = vperm.xlu0 %394, %v155
  %v396 = vpop.permute.xlu0 %395
  %v398 = vmul.f32 %v390, %v396
  %v399 = vmul.f32 %v391, %v396
  %v400 = vmul.f32 %v392, %v396
  %v401 = vmul.f32 %v393, %v396
  %v402 = vadd.f32 %v362, %v398
  %v403 = vadd.f32 %v363, %v399
  %v404 = vadd.f32 %v364, %v400
  %v405 = vadd.f32 %v365, %v401
  %406 = vrot.lane.b32.xlu0 %v151, 112
  %v407 = vpop.permute.xlu0 %406
  %408 = vrot.lane.b32.xlu0 %v152, 112
  %v409 = vpop.permute.xlu0 %408
  %410 = vrot.lane.b32.xlu0 %v153, 112
  %v411 = vpop.permute.xlu0 %410
  %412 = vrot.lane.b32.xlu0 %v154, 112
  %v413 = vpop.permute.xlu0 %412
  %vm414 = vcmp.lt.s32.totalorder %v165, 112
  %v415 = vsel %vm414, %v411, %v413
  %v416 = vsel %vm414, %v409, %v411
  %v417 = vsel %vm414, %v407, %v409
  %v418 = vsel %vm414, %v413, %v407
  %s419 = scalar_lea.vmem %s1, 7
  %v420 = vld [vmem:[%s419] ss:$8 sm:$0xf]
  %v422 = vperm.slane %v420, 0
  %v423 = vperm.slane %v420, 1
  %v424 = vperm.slane %v420, 2
  %v425 = vperm.slane %v420, 3
  %v430 = vmul.f32 %v417, %v422
  %v431 = vmul.f32 %v416, %v423
  %v432 = vmul.f32 %v415, %v424
  %v433 = vmul.f32 %v418, %v425
  %434 = vset.pattern.permute.xlu0 7
  %435 = vperm.xlu0 %434, %v155
  %v436 = vpop.permute.xlu0 %435
  %v438 = vmul.f32 %v430, %v436
  %v439 = vmul.f32 %v431, %v436
  %v440 = vmul.f32 %v432, %v436
  %v441 = vmul.f32 %v433, %v436
  %v442 = vadd.f32 %v402, %v438
  %v443 = vadd.f32 %v403, %v439
  %v444 = vadd.f32 %v404, %v440
  %v445 = vadd.f32 %v405, %v441
  %446 = vrot.lane.b32.xlu0 %v151, 111
  %v447 = vpop.permute.xlu0 %446
  %448 = vrot.lane.b32.xlu0 %v152, 111
  %v449 = vpop.permute.xlu0 %448
  %450 = vrot.lane.b32.xlu0 %v153, 111
  %v451 = vpop.permute.xlu0 %450
  %452 = vrot.lane.b32.xlu0 %v154, 111
  %v453 = vpop.permute.xlu0 %452
  %vm454 = vcmp.lt.s32.totalorder %v165, 111
  %v455 = vsel %vm454, %v451, %v453
  %v456 = vsel %vm454, %v449, %v451
  %v457 = vsel %vm454, %v447, %v449
  %v458 = vsel %vm454, %v453, %v447
  %s459 = scalar_lea.vmem %s1, 32
  %v460 = vld [vmem:[%s459] ss:$8 sm:$0xf]
  %v462 = vperm.slane %v460, 0
  %v463 = vperm.slane %v460, 1
  %v464 = vperm.slane %v460, 2
  %v465 = vperm.slane %v460, 3
  %v470 = vmul.f32 %v457, %v462
  %v471 = vmul.f32 %v456, %v463
  %v472 = vmul.f32 %v455, %v464
  %v473 = vmul.f32 %v458, %v465
  %474 = vset.pattern.permute.xlu0 8
  %475 = vperm.xlu0 %474, %v155
  %v476 = vpop.permute.xlu0 %475
  %v478 = vmul.f32 %v470, %v476
  %v479 = vmul.f32 %v471, %v476
  %v480 = vmul.f32 %v472, %v476
  %v481 = vmul.f32 %v473, %v476
  %v482 = vadd.f32 %v442, %v478
  %v483 = vadd.f32 %v443, %v479
  %v484 = vadd.f32 %v444, %v480
  %v485 = vadd.f32 %v445, %v481
  %v486 = vld [vmem:[%s5] sm:$0xf]
  %488 = vset.pattern.permute.xlu0 0
  %489 = vperm.xlu0 %488, %v486
  %v490 = vpop.permute.xlu0 %489
  %v492 = vadd.f32 %v482, %v490
  %v493 = vadd.f32 %v483, %v490
  %v494 = vadd.f32 %v484, %v490
  %v495 = vadd.f32 %v485, %v490
  %v496 = vld [vmem:[%s6] sm:$0xff]
  %v497 = vld [vmem:[%s6 + $0x8] sm:$0xff]
  %v498 = vld [vmem:[%s7] sm:$0xff]
  %v499 = vld [vmem:[%s7 + $0x8] sm:$0xff]
  %501 = vset.pattern.permute.xlu0 0
  %502 = vperm.xlu0 %501, %v498
  %v503 = vpop.permute.xlu0 %502
  %506 = vset.pattern.permute.xlu0 0
  %507 = vperm.xlu0 %506, %v499
  %v508 = vpop.permute.xlu0 %507
  %vm510 = vcmask 31744
  %v512 = vsel %vm510, %v496, 0
  %v515 = vsel %vm510, %v497, 0
  %vm517 = vcmask 1043456
  %v519 = vsel %vm517, %v492, 0
  %v522 = vsel %vm517, %v493, 0
  %v525 = vsel %vm517, %v494, 0
  %v528 = vsel %vm517, %v495, 0
  %530 = vmatpush.msra.mxu0 0.0
  %531 = vmatpush.msra.mxu0 0.0
  %532 = vmatpush.msra.mxu0 0.0
  %533 = vmatpush.msra.mxu0 0.0
  %534 = vmatpush.msra.mxu0 0.0
  %535 = vmatpush.msra.mxu0 0.0
  %536 = vmatpush.msra.mxu0 0.0
  %537 = vmatpush.msra.mxu0 0.0
  %538 = vmatpush.msra.mxu0 0.0
  %539 = vmatpush.msra.mxu0 0.0
  %540 = vmatpush.msra.mxu0 0.0
  %541 = vmatpush.msra.mxu0 0.0
  %542 = vmatpush.msra.mxu0 0.0
  %543 = vmatpush.msra.mxu0 0.0
  %544 = vmatpush.msra.mxu0 0.0
  %545 = vmatpush.msra.mxu0 %v519
  %546 = vmatmul.f32.gmra.mxu0 %v512
  %v547 = vpop.f32.mrf.mxu0
  %v548 = vadd.f32 %v503, %v547
  %549 = vmatmul.f32.gmra.mxu0 %v515
  %v550 = vpop.f32.mrf.mxu0
  %v551 = vadd.f32 %v508, %v550
  %552 = vdwg.mxu0
  %553 = vmatpush.msra.mxu0 0.0
  %554 = vmatpush.msra.mxu0 0.0
  %555 = vmatpush.msra.mxu0 0.0
  %556 = vmatpush.msra.mxu0 0.0
  %557 = vmatpush.msra.mxu0 0.0
  %558 = vmatpush.msra.mxu0 0.0
  %559 = vmatpush.msra.mxu0 0.0
  %560 = vmatpush.msra.mxu0 0.0
  %561 = vmatpush.msra.mxu0 0.0
  %562 = vmatpush.msra.mxu0 0.0
  %563 = vmatpush.msra.mxu0 0.0
  %564 = vmatpush.msra.mxu0 0.0
  %565 = vmatpush.msra.mxu0 0.0
  %566 = vmatpush.msra.mxu0 0.0
  %567 = vmatpush.msra.mxu0 0.0
  %568 = vmatpush.msra.mxu0 %v522
  %569 = vmatmul.f32.gmra.mxu0 %v512
  %v570 = vpop.f32.mrf.mxu0
  %v571 = vadd.f32 %v503, %v570
  %572 = vmatmul.f32.gmra.mxu0 %v515
  %v573 = vpop.f32.mrf.mxu0
  %v574 = vadd.f32 %v508, %v573
  %575 = vdwg.mxu0
  %576 = vmatpush.msra.mxu0 0.0
  %577 = vmatpush.msra.mxu0 0.0
  %578 = vmatpush.msra.mxu0 0.0
  %579 = vmatpush.msra.mxu0 0.0
  %580 = vmatpush.msra.mxu0 0.0
  %581 = vmatpush.msra.mxu0 0.0
  %582 = vmatpush.msra.mxu0 0.0
  %583 = vmatpush.msra.mxu0 0.0
  %584 = vmatpush.msra.mxu0 0.0
  %585 = vmatpush.msra.mxu0 0.0
  %586 = vmatpush.msra.mxu0 0.0
  %587 = vmatpush.msra.mxu0 0.0
  %588 = vmatpush.msra.mxu0 0.0
  %589 = vmatpush.msra.mxu0 0.0
  %590 = vmatpush.msra.mxu0 0.0
  %591 = vmatpush.msra.mxu0 %v525
  %592 = vmatmul.f32.gmra.mxu0 %v512
  %v593 = vpop.f32.mrf.mxu0
  %v594 = vadd.f32 %v503, %v593
  %595 = vmatmul.f32.gmra.mxu0 %v515
  %v596 = vpop.f32.mrf.mxu0
  %v597 = vadd.f32 %v508, %v596
  %598 = vdwg.mxu0
  %599 = vmatpush.msra.mxu0 0.0
  %600 = vmatpush.msra.mxu0 0.0
  %601 = vmatpush.msra.mxu0 0.0
  %602 = vmatpush.msra.mxu0 0.0
  %603 = vmatpush.msra.mxu0 0.0
  %604 = vmatpush.msra.mxu0 0.0
  %605 = vmatpush.msra.mxu0 0.0
  %606 = vmatpush.msra.mxu0 0.0
  %607 = vmatpush.msra.mxu0 0.0
  %608 = vmatpush.msra.mxu0 0.0
  %609 = vmatpush.msra.mxu0 0.0
  %610 = vmatpush.msra.mxu0 0.0
  %611 = vmatpush.msra.mxu0 0.0
  %612 = vmatpush.msra.mxu0 0.0
  %613 = vmatpush.msra.mxu0 0.0
  %614 = vmatpush.msra.mxu0 %v528
  %615 = vmatmul.f32.gmra.mxu0 %v512
  %v616 = vpop.f32.mrf.mxu0
  %v617 = vadd.f32 %v503, %v616
  %618 = vmatmul.f32.gmra.mxu0 %v515
  %v619 = vpop.f32.mrf.mxu0
  %v620 = vadd.f32 %v508, %v619
  %621 = vdwg.mxu0
  %622 = vrot.lane.b32.xlu0 %v56, 17
  %v623 = vpop.permute.xlu0 %622
  %624 = vrot.lane.b32.xlu0 %v57, 17
  %v625 = vpop.permute.xlu0 %624
  %626 = vrot.lane.b32.xlu0 %v58, 17
  %v627 = vpop.permute.xlu0 %626
  %628 = vrot.lane.b32.xlu0 %v59, 17
  %v629 = vpop.permute.xlu0 %628
  %v630 = vsel %vm166, %v627, %v629
  %v631 = vsel %vm166, %v625, %v627
  %v632 = vsel %vm166, %v623, %v625
  %v633 = vsel %vm166, %v629, %v623
  %v634 = vmul.f32 %v633, %v173
  %v635 = vmul.f32 %v632, %v174
  %v636 = vmul.f32 %v631, %v175
  %v637 = vmul.f32 %v630, %v176
  %638 = vrot.lane.b32.xlu0 %v56, 16
  %v639 = vpop.permute.xlu0 %638
  %640 = vrot.lane.b32.xlu0 %v57, 16
  %v641 = vpop.permute.xlu0 %640
  %642 = vrot.lane.b32.xlu0 %v58, 16
  %v643 = vpop.permute.xlu0 %642
  %644 = vrot.lane.b32.xlu0 %v59, 16
  %v645 = vpop.permute.xlu0 %644
  %v646 = vsel %vm202, %v643, %v645
  %v647 = vsel %vm202, %v641, %v643
  %v648 = vsel %vm202, %v639, %v641
  %v649 = vsel %vm202, %v645, %v639
  %v650 = vmul.f32 %v649, %v210
  %v651 = vmul.f32 %v648, %v211
  %v652 = vmul.f32 %v647, %v212
  %v653 = vmul.f32 %v646, %v213
  %v654 = vadd.f32 %v634, %v650
  %v655 = vadd.f32 %v635, %v651
  %v656 = vadd.f32 %v636, %v652
  %v657 = vadd.f32 %v637, %v653
  %658 = vrot.lane.b32.xlu0 %v56, 15
  %v659 = vpop.permute.xlu0 %658
  %660 = vrot.lane.b32.xlu0 %v57, 15
  %v661 = vpop.permute.xlu0 %660
  %662 = vrot.lane.b32.xlu0 %v58, 15
  %v663 = vpop.permute.xlu0 %662
  %664 = vrot.lane.b32.xlu0 %v59, 15
  %v665 = vpop.permute.xlu0 %664
  %v666 = vsel %vm242, %v663, %v665
  %v667 = vsel %vm242, %v661, %v663
  %v668 = vsel %vm242, %v659, %v661
  %v669 = vsel %vm242, %v665, %v659
  %v670 = vmul.f32 %v669, %v250
  %v671 = vmul.f32 %v668, %v251
  %v672 = vmul.f32 %v667, %v252
  %v673 = vmul.f32 %v666, %v253
  %v674 = vadd.f32 %v654, %v670
  %v675 = vadd.f32 %v655, %v671
  %v676 = vadd.f32 %v656, %v672
  %v677 = vadd.f32 %v657, %v673
  %678 = vrot.lane.b32.xlu0 %v56, 1
  %v679 = vpop.permute.xlu0 %678
  %680 = vrot.lane.b32.xlu0 %v57, 1
  %v681 = vpop.permute.xlu0 %680
  %682 = vrot.lane.b32.xlu0 %v58, 1
  %v683 = vpop.permute.xlu0 %682
  %684 = vrot.lane.b32.xlu0 %v59, 1
  %v685 = vpop.permute.xlu0 %684
  %v686 = vsel %vm282, %v683, %v685
  %v687 = vsel %vm282, %v681, %v683
  %v688 = vsel %vm282, %v679, %v681
  %v689 = vsel %vm282, %v685, %v679
  %v690 = vmul.f32 %v689, %v290
  %v691 = vmul.f32 %v688, %v291
  %v692 = vmul.f32 %v687, %v292
  %v693 = vmul.f32 %v686, %v293
  %v694 = vadd.f32 %v674, %v690
  %v695 = vadd.f32 %v675, %v691
  %v696 = vadd.f32 %v676, %v692
  %v697 = vadd.f32 %v677, %v693
  %v698 = vadd.f32 %v694, %v56
  %v699 = vadd.f32 %v695, %v57
  %v700 = vadd.f32 %v696, %v58
  %v701 = vadd.f32 %v697, %v59
  %702 = vrot.lane.b32.xlu0 %v56, 127
  %v703 = vpop.permute.xlu0 %702
  %704 = vrot.lane.b32.xlu0 %v57, 127
  %v705 = vpop.permute.xlu0 %704
  %706 = vrot.lane.b32.xlu0 %v58, 127
  %v707 = vpop.permute.xlu0 %706
  %708 = vrot.lane.b32.xlu0 %v59, 127
  %v709 = vpop.permute.xlu0 %708
  %v710 = vsel %vm334, %v707, %v709
  %v711 = vsel %vm334, %v705, %v707
  %v712 = vsel %vm334, %v703, %v705
  %v713 = vsel %vm334, %v709, %v703
  %v714 = vmul.f32 %v712, %v342
  %v715 = vmul.f32 %v711, %v343
  %v716 = vmul.f32 %v710, %v344
  %v717 = vmul.f32 %v713, %v345
  %v718 = vadd.f32 %v698, %v714
  %v719 = vadd.f32 %v699, %v715
  %v720 = vadd.f32 %v700, %v716
  %v721 = vadd.f32 %v701, %v717
  %722 = vrot.lane.b32.xlu0 %v56, 113
  %v723 = vpop.permute.xlu0 %722
  %724 = vrot.lane.b32.xlu0 %v57, 113
  %v725 = vpop.permute.xlu0 %724
  %726 = vrot.lane.b32.xlu0 %v58, 113
  %v727 = vpop.permute.xlu0 %726
  %728 = vrot.lane.b32.xlu0 %v59, 113
  %v729 = vpop.permute.xlu0 %728
  %v730 = vsel %vm374, %v727, %v729
  %v731 = vsel %vm374, %v725, %v727
  %v732 = vsel %vm374, %v723, %v725
  %v733 = vsel %vm374, %v729, %v723
  %v734 = vmul.f32 %v732, %v382
  %v735 = vmul.f32 %v731, %v383
  %v736 = vmul.f32 %v730, %v384
  %v737 = vmul.f32 %v733, %v385
  %v738 = vadd.f32 %v718, %v734
  %v739 = vadd.f32 %v719, %v735
  %v740 = vadd.f32 %v720, %v736
  %v741 = vadd.f32 %v721, %v737
  %742 = vrot.lane.b32.xlu0 %v56, 112
  %v743 = vpop.permute.xlu0 %742
  %744 = vrot.lane.b32.xlu0 %v57, 112
  %v745 = vpop.permute.xlu0 %744
  %746 = vrot.lane.b32.xlu0 %v58, 112
  %v747 = vpop.permute.xlu0 %746
  %748 = vrot.lane.b32.xlu0 %v59, 112
  %v749 = vpop.permute.xlu0 %748
  %v750 = vsel %vm414, %v747, %v749
  %v751 = vsel %vm414, %v745, %v747
  %v752 = vsel %vm414, %v743, %v745
  %v753 = vsel %vm414, %v749, %v743
  %v754 = vmul.f32 %v752, %v422
  %v755 = vmul.f32 %v751, %v423
  %v756 = vmul.f32 %v750, %v424
  %v757 = vmul.f32 %v753, %v425
  %v758 = vadd.f32 %v738, %v754
  %v759 = vadd.f32 %v739, %v755
  %v760 = vadd.f32 %v740, %v756
  %v761 = vadd.f32 %v741, %v757
  %762 = vrot.lane.b32.xlu0 %v56, 111
  %v763 = vpop.permute.xlu0 %762
  %764 = vrot.lane.b32.xlu0 %v57, 111
  %v765 = vpop.permute.xlu0 %764
  %766 = vrot.lane.b32.xlu0 %v58, 111
  %v767 = vpop.permute.xlu0 %766
  %768 = vrot.lane.b32.xlu0 %v59, 111
  %v769 = vpop.permute.xlu0 %768
  %v770 = vsel %vm454, %v767, %v769
  %v771 = vsel %vm454, %v765, %v767
  %v772 = vsel %vm454, %v763, %v765
  %v773 = vsel %vm454, %v769, %v763
  %v774 = vmul.f32 %v772, %v462
  %v775 = vmul.f32 %v771, %v463
  %v776 = vmul.f32 %v770, %v464
  %v777 = vmul.f32 %v773, %v465
  %v778 = vadd.f32 %v758, %v774
  %v779 = vadd.f32 %v759, %v775
  %v780 = vadd.f32 %v760, %v776
  %v781 = vadd.f32 %v761, %v777
  %v782 = vmul.f32 %v778, 0.11111111
  %v783 = vmul.f32 %v779, 0.11111111
  %v784 = vmul.f32 %v780, 0.11111111
  %v785 = vmul.f32 %v781, 0.11111111
  %v786 = vmax.f32 %v782, 0.0
  %v787 = vmax.f32 %v783, 0.0
  %v788 = vmax.f32 %v784, 0.0
  %v789 = vmax.f32 %v785, 0.0
  %790 = vst [vmem:[#allocation2] sm:$0xff] %v786
  %791 = vst [vmem:[#allocation2 + $0x8] sm:$0xff] %v787
  %792 = vst [vmem:[#allocation2 + $0x10] sm:$0xff] %v788
  %793 = vst [vmem:[#allocation2 + $0x18] sm:$0xff] %v789
  %v794 = vmax.f32 %v548, 0.0
  %v795 = vmax.f32 %v571, 0.0
  %v796 = vmax.f32 %v594, 0.0
  %v797 = vmax.f32 %v617, 0.0
  %v798 = vmax.f32 %v551, 0.0
  %v799 = vmax.f32 %v574, 0.0
  %v800 = vmax.f32 %v597, 0.0
  %v801 = vmax.f32 %v620, 0.0
  %802 = vst [vmem:[#allocation2 + $0x20] sm:$0xff] %v794
  %803 = vst [vmem:[#allocation2 + $0x28] sm:$0xff] %v795
  %804 = vst [vmem:[#allocation2 + $0x30] sm:$0xff] %v796
  %805 = vst [vmem:[#allocation2 + $0x38] sm:$0xff] %v797
  %806 = vst [vmem:[#allocation2 + $0x40] sm:$0xff] %v798
  %807 = vst [vmem:[#allocation2 + $0x48] sm:$0xff] %v799
  %808 = vst [vmem:[#allocation2 + $0x50] sm:$0xff] %v800
  %809 = vst [vmem:[#allocation2 + $0x58] sm:$0xff] %v801
  %v810 = vld [vmem:[#allocation2] sm:$0xff]
  %v811 = vld [vmem:[#allocation2 + $0x8] sm:$0xff]
  %v812 = vld [vmem:[#allocation2 + $0x10] sm:$0xff]
  %v813 = vld [vmem:[#allocation2 + $0x18] sm:$0xff]
  %v814 = vld [vmem:[#allocation2 + $0x20] sm:$0xff]
  %v815 = vld [vmem:[#allocation2 + $0x28] sm:$0xff]
  %v816 = vld [vmem:[#allocation2 + $0x30] sm:$0xff]
  %v817 = vld [vmem:[#allocation2 + $0x38] sm:$0xff]
  %v818 = vld [vmem:[#allocation2 + $0x40] sm:$0xff]
  %v819 = vld [vmem:[#allocation2 + $0x48] sm:$0xff]
  %v820 = vld [vmem:[#allocation2 + $0x50] sm:$0xff]
  %v821 = vld [vmem:[#allocation2 + $0x58] sm:$0xff]
  %v822 = vld [vmem:[%s8] sm:$0x3f]
  %v823 = vld [vmem:[%s9] sm:$0x3f]
  %825 = vset.pattern.permute.xlu0 0
  %826 = vperm.xlu0 %825, %v823
  %v827 = vpop.permute.xlu0 %826
  %vm829 = vcmask 195584
  %v831 = vsel %vm829, %v822, 0
  %833 = vmatpush.msra.mxu0 0.0
  %834 = vmatpush.msra.mxu0 0.0
  %835 = vmatpush.msra.mxu0 0.0
  %836 = vmatpush.msra.mxu0 0.0
  %837 = vmatpush.msra.mxu0 0.0
  %838 = vmatpush.msra.mxu0 0.0
  %839 = vmatpush.msra.mxu0 0.0
  %840 = vmatpush.msra.mxu0 0.0
  %841 = vmatpush.msra.mxu0 0.0
  %842 = vmatpush.msra.mxu0 0.0
  %843 = vmatpush.msra.mxu0 0.0
  %844 = vmatpush.msra.mxu0 0.0
  %845 = vmatpush.msra.mxu0 0.0
  %846 = vmatpush.msra.mxu0 %v818
  %847 = vmatpush.msra.mxu0 %v814
  %848 = vmatpush.msra.mxu0 %v810
  %849 = vmatmul.f32.gmra.mxu0 %v831
  %v850 = vpop.f32.mrf.mxu0
  %v851 = vadd.f32 %v827, %v850
  %852 = vdwg.mxu0
  %853 = vmatpush.msra.mxu0 0.0
  %854 = vmatpush.msra.mxu0 0.0
  %855 = vmatpush.msra.mxu0 0.0
  %856 = vmatpush.msra.mxu0 0.0
  %857 = vmatpush.msra.mxu0 0.0
  %858 = vmatpush.msra.mxu0 0.0
  %859 = vmatpush.msra.mxu0 0.0
  %860 = vmatpush.msra.mxu0 0.0
  %861 = vmatpush.msra.mxu0 0.0
  %862 = vmatpush.msra.mxu0 0.0
  %863 = vmatpush.msra.mxu0 0.0
  %864 = vmatpush.msra.mxu0 0.0
  %865 = vmatpush.msra.mxu0 0.0
  %866 = vmatpush.msra.mxu0 %v819
  %867 = vmatpush.msra.mxu0 %v815
  %868 = vmatpush.msra.mxu0 %v811
  %869 = vmatmul.f32.gmra.mxu0 %v831
  %v870 = vpop.f32.mrf.mxu0
  %v871 = vadd.f32 %v827, %v870
  %872 = vdwg.mxu0
  %873 = vmatpush.msra.mxu0 0.0
  %874 = vmatpush.msra.mxu0 0.0
  %875 = vmatpush.msra.mxu0 0.0
  %876 = vmatpush.msra.mxu0 0.0
  %877 = vmatpush.msra.mxu0 0.0
  %878 = vmatpush.msra.mxu0 0.0
  %879 = vmatpush.msra.mxu0 0.0
  %880 = vmatpush.msra.mxu0 0.0
  %881 = vmatpush.msra.mxu0 0.0
  %882 = vmatpush.msra.mxu0 0.0
  %883 = vmatpush.msra.mxu0 0.0
  %884 = vmatpush.msra.mxu0 0.0
  %885 = vmatpush.msra.mxu0 0.0
  %886 = vmatpush.msra.mxu0 %v820
  %887 = vmatpush.msra.mxu0 %v816
  %888 = vmatpush.msra.mxu0 %v812
  %889 = vmatmul.f32.gmra.mxu0 %v831
  %v890 = vpop.f32.mrf.mxu0
  %v891 = vadd.f32 %v827, %v890
  %892 = vdwg.mxu0
  %893 = vmatpush.msra.mxu0 0.0
  %894 = vmatpush.msra.mxu0 0.0
  %895 = vmatpush.msra.mxu0 0.0
  %896 = vmatpush.msra.mxu0 0.0
  %897 = vmatpush.msra.mxu0 0.0
  %898 = vmatpush.msra.mxu0 0.0
  %899 = vmatpush.msra.mxu0 0.0
  %900 = vmatpush.msra.mxu0 0.0
  %901 = vmatpush.msra.mxu0 0.0
  %902 = vmatpush.msra.mxu0 0.0
  %903 = vmatpush.msra.mxu0 0.0
  %904 = vmatpush.msra.mxu0 0.0
  %905 = vmatpush.msra.mxu0 0.0
  %906 = vmatpush.msra.mxu0 %v821
  %907 = vmatpush.msra.mxu0 %v817
  %908 = vmatpush.msra.mxu0 %v813
  %909 = vmatmul.f32.gmra.mxu0 %v831
  %v910 = vpop.f32.mrf.mxu0
  %v911 = vadd.f32 %v827, %v910
  %912 = vdwg.mxu0
  %v913 = vmax.f32 %v851, 0.0
  %v914 = vmax.f32 %v871, 0.0
  %v915 = vmax.f32 %v891, 0.0
  %v916 = vmax.f32 %v911, 0.0
  %v917 = vld [vmem:[%s10] sm:$0x3f]
  %918 = vrot.lane.b32.xlu0 %v913, 17
  %v919 = vpop.permute.xlu0 %918
  %920 = vrot.lane.b32.xlu0 %v914, 17
  %v921 = vpop.permute.xlu0 %920
  %922 = vrot.lane.b32.xlu0 %v915, 17
  %v923 = vpop.permute.xlu0 %922
  %924 = vrot.lane.b32.xlu0 %v916, 17
  %v925 = vpop.permute.xlu0 %924
  %v926 = vsel %vm166, %v923, %v925
  %v927 = vsel %vm166, %v921, %v923
  %v928 = vsel %vm166, %v919, %v921
  %v929 = vsel %vm166, %v925, %v919
  %v930 = vld [vmem:[%s1] ss:$8 sm:$0xf]
  %v932 = vperm.slane %v930, 0
  %v933 = vperm.slane %v930, 1
  %v934 = vperm.slane %v930, 2
  %v935 = vperm.slane %v930, 3
  %v940 = vmul.f32 %v929, %v932
  %v941 = vmul.f32 %v928, %v933
  %v942 = vmul.f32 %v927, %v934
  %v943 = vmul.f32 %v926, %v935
  %945 = vset.pattern.permute.xlu0 0
  %946 = vperm.xlu0 %945, %v917
  %v947 = vpop.permute.xlu0 %946
  %v949 = vmul.f32 %v940, %v947
  %v950 = vmul.f32 %v941, %v947
  %v951 = vmul.f32 %v942, %v947
  %v952 = vmul.f32 %v943, %v947
  %953 = vrot.lane.b32.xlu0 %v913, 16
  %v954 = vpop.permute.xlu0 %953
  %955 = vrot.lane.b32.xlu0 %v914, 16
  %v956 = vpop.permute.xlu0 %955
  %957 = vrot.lane.b32.xlu0 %v915, 16
  %v958 = vpop.permute.xlu0 %957
  %959 = vrot.lane.b32.xlu0 %v916, 16
  %v960 = vpop.permute.xlu0 %959
  %v961 = vsel %vm202, %v958, %v960
  %v962 = vsel %vm202, %v956, %v958
  %v963 = vsel %vm202, %v954, %v956
  %v964 = vsel %vm202, %v960, %v954
  %v965 = vld [vmem:[%s207] ss:$8 sm:$0xf]
  %v967 = vperm.slane %v965, 0
  %v968 = vperm.slane %v965, 1
  %v969 = vperm.slane %v965, 2
  %v970 = vperm.slane %v965, 3
  %v975 = vmul.f32 %v964, %v967
  %v976 = vmul.f32 %v963, %v968
  %v977 = vmul.f32 %v962, %v969
  %v978 = vmul.f32 %v961, %v970
  %979 = vset.pattern.permute.xlu0 1
  %980 = vperm.xlu0 %979, %v917
  %v981 = vpop.permute.xlu0 %980
  %v983 = vmul.f32 %v975, %v981
  %v984 = vmul.f32 %v976, %v981
  %v985 = vmul.f32 %v977, %v981
  %v986 = vmul.f32 %v978, %v981
  %v987 = vadd.f32 %v949, %v983
  %v988 = vadd.f32 %v950, %v984
  %v989 = vadd.f32 %v951, %v985
  %v990 = vadd.f32 %v952, %v986
  %991 = vrot.lane.b32.xlu0 %v913, 15
  %v992 = vpop.permute.xlu0 %991
  %993 = vrot.lane.b32.xlu0 %v914, 15
  %v994 = vpop.permute.xlu0 %993
  %995 = vrot.lane.b32.xlu0 %v915, 15
  %v996 = vpop.permute.xlu0 %995
  %997 = vrot.lane.b32.xlu0 %v916, 15
  %v998 = vpop.permute.xlu0 %997
  %v999 = vsel %vm242, %v996, %v998
  %v1000 = vsel %vm242, %v994, %v996
  %v1001 = vsel %vm242, %v992, %v994
  %v1002 = vsel %vm242, %v998, %v992
  %v1003 = vld [vmem:[%s247] ss:$8 sm:$0xf]
  %v1005 = vperm.slane %v1003, 0
  %v1006 = vperm.slane %v1003, 1
  %v1007 = vperm.slane %v1003, 2
  %v1008 = vperm.slane %v1003, 3
  %v1013 = vmul.f32 %v1002, %v1005
  %v1014 = vmul.f32 %v1001, %v1006
  %v1015 = vmul.f32 %v1000, %v1007
  %v1016 = vmul.f32 %v999, %v1008
  %1017 = vset.pattern.permute.xlu0 2
  %1018 = vperm.xlu0 %1017, %v917
  %v1019 = vpop.permute.xlu0 %1018
  %v1021 = vmul.f32 %v1013, %v1019
  %v1022 = vmul.f32 %v1014, %v1019
  %v1023 = vmul.f32 %v1015, %v1019
  %v1024 = vmul.f32 %v1016, %v1019
  %v1025 = vadd.f32 %v987, %v1021
  %v1026 = vadd.f32 %v988, %v1022
  %v1027 = vadd.f32 %v989, %v1023
  %v1028 = vadd.f32 %v990, %v1024
  %1029 = vrot.lane.b32.xlu0 %v913, 1
  %v1030 = vpop.permute.xlu0 %1029
  %1031 = vrot.lane.b32.xlu0 %v914, 1
  %v1032 = vpop.permute.xlu0 %1031
  %1033 = vrot.lane.b32.xlu0 %v915, 1
  %v1034 = vpop.permute.xlu0 %1033
  %1035 = vrot.lane.b32.xlu0 %v916, 1
  %v1036 = vpop.permute.xlu0 %1035
  %v1037 = vsel %vm282, %v1034, %v1036
  %v1038 = vsel %vm282, %v1032, %v1034
  %v1039 = vsel %vm282, %v1030, %v1032
  %v1040 = vsel %vm282, %v1036, %v1030
  %v1041 = vld [vmem:[%s287] ss:$8 sm:$0xf]
  %v1043 = vperm.slane %v1041, 0
  %v1044 = vperm.slane %v1041, 1
  %v1045 = vperm.slane %v1041, 2
  %v1046 = vperm.slane %v1041, 3
  %v1051 = vmul.f32 %v1040, %v1043
  %v1052 = vmul.f32 %v1039, %v1044
  %v1053 = vmul.f32 %v1038, %v1045
  %v1054 = vmul.f32 %v1037, %v1046
  %1055 = vset.pattern.permute.xlu0 3
  %1056 = vperm.xlu0 %1055, %v917
  %v1057 = vpop.permute.xlu0 %1056
  %v1059 = vmul.f32 %v1051, %v1057
  %v1060 = vmul.f32 %v1052, %v1057
  %v1061 = vmul.f32 %v1053, %v1057
  %v1062 = vmul.f32 %v1054, %v1057
  %v1063 = vadd.f32 %v1025, %v1059
  %v1064 = vadd.f32 %v1026, %v1060
  %v1065 = vadd.f32 %v1027, %v1061
  %v1066 = vadd.f32 %v1028, %v1062
  %1067 = vset.pattern.permute.xlu0 4
  %1068 = vperm.xlu0 %1067, %v917
  %v1069 = vpop.permute.xlu0 %1068
  %v1071 = vmul.f32 %v913, %v1069
  %v1072 = vmul.f32 %v914, %v1069
  %v1073 = vmul.f32 %v915, %v1069
  %v1074 = vmul.f32 %v916, %v1069
  %v1075 = vadd.f32 %v1063, %v1071
  %v1076 = vadd.f32 %v1064, %v1072
  %v1077 = vadd.f32 %v1065, %v1073
  %v1078 = vadd.f32 %v1066, %v1074
  %1079 = vrot.lane.b32.xlu0 %v913, 127
  %v1080 = vpop.permute.xlu0 %1079
  %1081 = vrot.lane.b32.xlu0 %v914, 127
  %v1082 = vpop.permute.xlu0 %1081
  %1083 = vrot.lane.b32.xlu0 %v915, 127
  %v1084 = vpop.permute.xlu0 %1083
  %1085 = vrot.lane.b32.xlu0 %v916, 127
  %v1086 = vpop.permute.xlu0 %1085
  %v1087 = vsel %vm334, %v1084, %v1086
  %v1088 = vsel %vm334, %v1082, %v1084
  %v1089 = vsel %vm334, %v1080, %v1082
  %v1090 = vsel %vm334, %v1086, %v1080
  %v1091 = vld [vmem:[%s339] ss:$8 sm:$0xf]
  %v1093 = vperm.slane %v1091, 0
  %v1094 = vperm.slane %v1091, 1
  %v1095 = vperm.slane %v1091, 2
  %v1096 = vperm.slane %v1091, 3
  %v1101 = vmul.f32 %v1089, %v1093
  %v1102 = vmul.f32 %v1088, %v1094
  %v1103 = vmul.f32 %v1087, %v1095
  %v1104 = vmul.f32 %v1090, %v1096
  %1105 = vset.pattern.permute.xlu0 5
  %1106 = vperm.xlu0 %1105, %v917
  %v1107 = vpop.permute.xlu0 %1106
  %v1109 = vmul.f32 %v1101, %v1107
  %v1110 = vmul.f32 %v1102, %v1107
  %v1111 = vmul.f32 %v1103, %v1107
  %v1112 = vmul.f32 %v1104, %v1107
  %v1113 = vadd.f32 %v1075, %v1109
  %v1114 = vadd.f32 %v1076, %v1110
  %v1115 = vadd.f32 %v1077, %v1111
  %v1116 = vadd.f32 %v1078, %v1112
  %1117 = vrot.lane.b32.xlu0 %v913, 113
  %v1118 = vpop.permute.xlu0 %1117
  %1119 = vrot.lane.b32.xlu0 %v914, 113
  %v1120 = vpop.permute.xlu0 %1119
  %1121 = vrot.lane.b32.xlu0 %v915, 113
  %v1122 = vpop.permute.xlu0 %1121
  %1123 = vrot.lane.b32.xlu0 %v916, 113
  %v1124 = vpop.permute.xlu0 %1123
  %v1125 = vsel %vm374, %v1122, %v1124
  %v1126 = vsel %vm374, %v1120, %v1122
  %v1127 = vsel %vm374, %v1118, %v1120
  %v1128 = vsel %vm374, %v1124, %v1118
  %v1129 = vld [vmem:[%s379] ss:$8 sm:$0xf]
  %v1131 = vperm.slane %v1129, 0
  %v1132 = vperm.slane %v1129, 1
  %v1133 = vperm.slane %v1129, 2
  %v1134 = vperm.slane %v1129, 3
  %v1139 = vmul.f32 %v1127, %v1131
  %v1140 = vmul.f32 %v1126, %v1132
  %v1141 = vmul.f32 %v1125, %v1133
  %v1142 = vmul.f32 %v1128, %v1134
  %1143 = vset.pattern.permute.xlu0 6
  %1144 = vperm.xlu0 %1143, %v917
  %v1145 = vpop.permute.xlu0 %1144
  %v1147 = vmul.f32 %v1139, %v1145
  %v1148 = vmul.f32 %v1140, %v1145
  %v1149 = vmul.f32 %v1141, %v1145
  %v1150 = vmul.f32 %v1142, %v1145
  %v1151 = vadd.f32 %v1113, %v1147
  %v1152 = vadd.f32 %v1114, %v1148
  %v1153 = vadd.f32 %v1115, %v1149
  %v1154 = vadd.f32 %v1116, %v1150
  %1155 = vrot.lane.b32.xlu0 %v913, 112
  %v1156 = vpop.permute.xlu0 %1155
  %1157 = vrot.lane.b32.xlu0 %v914, 112
  %v1158 = vpop.permute.xlu0 %1157
  %1159 = vrot.lane.b32.xlu0 %v915, 112
  %v1160 = vpop.permute.xlu0 %1159
  %1161 = vrot.lane.b32.xlu0 %v916, 112
  %v1162 = vpop.permute.xlu0 %1161
  %v1163 = vsel %vm414, %v1160, %v1162
  %v1164 = vsel %vm414, %v1158, %v1160
  %v1165 = vsel %vm414, %v1156, %v1158
  %v1166 = vsel %vm414, %v1162, %v1156
  %v1167 = vld [vmem:[%s419] ss:$8 sm:$0xf]
  %v1169 = vperm.slane %v1167, 0
  %v1170 = vperm.slane %v1167, 1
  %v1171 = vperm.slane %v1167, 2
  %v1172 = vperm.slane %v1167, 3
  %v1177 = vmul.f32 %v1165, %v1169
  %v1178 = vmul.f32 %v1164, %v1170
  %v1179 = vmul.f32 %v1163, %v1171
  %v1180 = vmul.f32 %v1166, %v1172
  %1181 = vset.pattern.permute.xlu0 7
  %1182 = vperm.xlu0 %1181, %v917
  %v1183 = vpop.permute.xlu0 %1182
  %v1185 = vmul.f32 %v1177, %v1183
  %v1186 = vmul.f32 %v1178, %v1183
  %v1187 = vmul.f32 %v1179, %v1183
  %v1188 = vmul.f32 %v1180, %v1183
  %v1189 = vadd.f32 %v1151, %v1185
  %v1190 = vadd.f32 %v1152, %v1186
  %v1191 = vadd.f32 %v1153, %v1187
  %v1192 = vadd.f32 %v1154, %v1188
  %1193 = vrot.lane.b32.xlu0 %v913, 111
  %v1194 = vpop.permute.xlu0 %1193
  %1195 = vrot.lane.b32.xlu0 %v914, 111
  %v1196 = vpop.permute.xlu0 %1195
  %1197 = vrot.lane.b32.xlu0 %v915, 111
  %v1198 = vpop.permute.xlu0 %1197
  %1199 = vrot.lane.b32.xlu0 %v916, 111
  %v1200 = vpop.permute.xlu0 %1199
  %v1201 = vsel %vm454, %v1198, %v1200
  %v1202 = vsel %vm454, %v1196, %v1198
  %v1203 = vsel %vm454, %v1194, %v1196
  %v1204 = vsel %vm454, %v1200, %v1194
  %v1205 = vld [vmem:[%s459] ss:$8 sm:$0xf]
  %v1207 = vperm.slane %v1205, 0
  %v1208 = vperm.slane %v1205, 1
  %v1209 = vperm.slane %v1205, 2
  %v1210 = vperm.slane %v1205, 3
  %v1215 = vmul.f32 %v1203, %v1207
  %v1216 = vmul.f32 %v1202, %v1208
  %v1217 = vmul.f32 %v1201, %v1209
  %v1218 = vmul.f32 %v1204, %v1210
  %1219 = vset.pattern.permute.xlu0 8
  %1220 = vperm.xlu0 %1219, %v917
  %v1221 = vpop.permute.xlu0 %1220
  %v1223 = vmul.f32 %v1215, %v1221
  %v1224 = vmul.f32 %v1216, %v1221
  %v1225 = vmul.f32 %v1217, %v1221
  %v1226 = vmul.f32 %v1218, %v1221
  %v1227 = vadd.f32 %v1189, %v1223
  %v1228 = vadd.f32 %v1190, %v1224
  %v1229 = vadd.f32 %v1191, %v1225
  %v1230 = vadd.f32 %v1192, %v1226
  %v1231 = vld [vmem:[%s11] sm:$0x3f]
  %1233 = vset.pattern.permute.xlu0 0
  %1234 = vperm.xlu0 %1233, %v1231
  %v1235 = vpop.permute.xlu0 %1234
  %v1237 = vadd.f32 %v1227, %v1235
  %v1238 = vadd.f32 %v1228, %v1235
  %v1239 = vadd.f32 %v1229, %v1235
  %v1240 = vadd.f32 %v1230, %v1235
  %v1241 = vld [vmem:[%s12] sm:$0xff]
  %v1242 = vld [vmem:[%s12 + $0x8] sm:$0xff]
  %v1243 = vld [vmem:[%s12 + $0x10] sm:$0xff]
  %v1244 = vld [vmem:[%s13] sm:$0xff]
  %v1245 = vld [vmem:[%s13 + $0x8] sm:$0xff]
  %v1246 = vld [vmem:[%s13 + $0x10] sm:$0xff]
  %1248 = vset.pattern.permute.xlu0 0
  %1249 = vperm.xlu0 %1248, %v1244
  %v1250 = vpop.permute.xlu0 %1249
  %1253 = vset.pattern.permute.xlu0 0
  %1254 = vperm.xlu0 %1253, %v1245
  %v1255 = vpop.permute.xlu0 %1254
  %1258 = vset.pattern.permute.xlu0 0
  %1259 = vperm.xlu0 %1258, %v1246
  %v1260 = vpop.permute.xlu0 %1259
  %vm1262 = vcmask 48128
  %v1264 = vsel %vm1262, %v1241, 0
  %v1267 = vsel %vm1262, %v1242, 0
  %v1270 = vsel %vm1262, %v1243, 0
  %vm1272 = vcmask 1045504
  %v1274 = vsel %vm1272, %v1237, 0
  %v1277 = vsel %vm1272, %v1238, 0
  %v1280 = vsel %vm1272, %v1239, 0
  %v1283 = vsel %vm1272, %v1240, 0
  %1285 = vmatpush.msra.mxu0 0.0
  %1286 = vmatpush.msra.mxu0 0.0
  %1287 = vmatpush.msra.mxu0 0.0
  %1288 = vmatpush.msra.mxu0 0.0
  %1289 = vmatpush.msra.mxu0 0.0
  %1290 = vmatpush.msra.mxu0 0.0
  %1291 = vmatpush.msra.mxu0 0.0
  %1292 = vmatpush.msra.mxu0 0.0
  %1293 = vmatpush.msra.mxu0 0.0
  %1294 = vmatpush.msra.mxu0 0.0
  %1295 = vmatpush.msra.mxu0 0.0
  %1296 = vmatpush.msra.mxu0 0.0
  %1297 = vmatpush.msra.mxu0 0.0
  %1298 = vmatpush.msra.mxu0 0.0
  %1299 = vmatpush.msra.mxu0 0.0
  %1300 = vmatpush.msra.mxu0 %v1274
  %1301 = vmatmul.f32.gmra.mxu0 %v1264
  %v1302 = vpop.f32.mrf.mxu0
  %v1303 = vadd.f32 %v1250, %v1302
  %1304 = vmatmul.f32.gmra.mxu0 %v1267
  %v1305 = vpop.f32.mrf.mxu0
  %v1306 = vadd.f32 %v1255, %v1305
  %1307 = vmatmul.f32.gmra.mxu0 %v1270
  %v1308 = vpop.f32.mrf.mxu0
  %v1309 = vadd.f32 %v1260, %v1308
  %1310 = vdwg.mxu0
  %1311 = vmatpush.msra.mxu0 0.0
  %1312 = vmatpush.msra.mxu0 0.0
  %1313 = vmatpush.msra.mxu0 0.0
  %1314 = vmatpush.msra.mxu0 0.0
  %1315 = vmatpush.msra.mxu0 0.0
  %1316 = vmatpush.msra.mxu0 0.0
  %1317 = vmatpush.msra.mxu0 0.0
  %1318 = vmatpush.msra.mxu0 0.0
  %1319 = vmatpush.msra.mxu0 0.0
  %1320 = vmatpush.msra.mxu0 0.0
  %1321 = vmatpush.msra.mxu0 0.0
  %1322 = vmatpush.msra.mxu0 0.0
  %1323 = vmatpush.msra.mxu0 0.0
  %1324 = vmatpush.msra.mxu0 0.0
  %1325 = vmatpush.msra.mxu0 0.0
  %1326 = vmatpush.msra.mxu0 %v1277
  %1327 = vmatmul.f32.gmra.mxu0 %v1264
  %v1328 = vpop.f32.mrf.mxu0
  %v1329 = vadd.f32 %v1250, %v1328
  %1330 = vmatmul.f32.gmra.mxu0 %v1267
  %v1331 = vpop.f32.mrf.mxu0
  %v1332 = vadd.f32 %v1255, %v1331
  %1333 = vmatmul.f32.gmra.mxu0 %v1270
  %v1334 = vpop.f32.mrf.mxu0
  %v1335 = vadd.f32 %v1260, %v1334
  %1336 = vdwg.mxu0
  %1337 = vmatpush.msra.mxu0 0.0
  %1338 = vmatpush.msra.mxu0 0.0
  %1339 = vmatpush.msra.mxu0 0.0
  %1340 = vmatpush.msra.mxu0 0.0
  %1341 = vmatpush.msra.mxu0 0.0
  %1342 = vmatpush.msra.mxu0 0.0
  %1343 = vmatpush.msra.mxu0 0.0
  %1344 = vmatpush.msra.mxu0 0.0
  %1345 = vmatpush.msra.mxu0 0.0
  %1346 = vmatpush.msra.mxu0 0.0
  %1347 = vmatpush.msra.mxu0 0.0
  %1348 = vmatpush.msra.mxu0 0.0
  %1349 = vmatpush.msra.mxu0 0.0
  %1350 = vmatpush.msra.mxu0 0.0
  %1351 = vmatpush.msra.mxu0 0.0
  %1352 = vmatpush.msra.mxu0 %v1280
  %1353 = vmatmul.f32.gmra.mxu0 %v1264
  %v1354 = vpop.f32.mrf.mxu0
  %v1355 = vadd.f32 %v1250, %v1354
  %1356 = vmatmul.f32.gmra.mxu0 %v1267
  %v1357 = vpop.f32.mrf.mxu0
  %v1358 = vadd.f32 %v1255, %v1357
  %1359 = vmatmul.f32.gmra.mxu0 %v1270
  %v1360 = vpop.f32.mrf.mxu0
  %v1361 = vadd.f32 %v1260, %v1360
  %1362 = vdwg.mxu0
  %1363 = vmatpush.msra.mxu0 0.0
  %1364 = vmatpush.msra.mxu0 0.0
  %1365 = vmatpush.msra.mxu0 0.0
  %1366 = vmatpush.msra.mxu0 0.0
  %1367 = vmatpush.msra.mxu0 0.0
  %1368 = vmatpush.msra.mxu0 0.0
  %1369 = vmatpush.msra.mxu0 0.0
  %1370 = vmatpush.msra.mxu0 0.0
  %1371 = vmatpush.msra.mxu0 0.0
  %1372 = vmatpush.msra.mxu0 0.0
  %1373 = vmatpush.msra.mxu0 0.0
  %1374 = vmatpush.msra.mxu0 0.0
  %1375 = vmatpush.msra.mxu0 0.0
  %1376 = vmatpush.msra.mxu0 0.0
  %1377 = vmatpush.msra.mxu0 0.0
  %1378 = vmatpush.msra.mxu0 %v1283
  %1379 = vmatmul.f32.gmra.mxu0 %v1264
  %v1380 = vpop.f32.mrf.mxu0
  %v1381 = vadd.f32 %v1250, %v1380
  %1382 = vmatmul.f32.gmra.mxu0 %v1267
  %v1383 = vpop.f32.mrf.mxu0
  %v1384 = vadd.f32 %v1255, %v1383
  %1385 = vmatmul.f32.gmra.mxu0 %v1270
  %v1386 = vpop.f32.mrf.mxu0
  %v1387 = vadd.f32 %v1260, %v1386
  %1388 = vdwg.mxu0
  %v1389 = vadd.f32 %v810, %v1303
  %v1390 = vadd.f32 %v811, %v1329
  %v1391 = vadd.f32 %v812, %v1355
  %v1392 = vadd.f32 %v813, %v1381
  %v1393 = vadd.f32 %v814, %v1306
  %v1394 = vadd.f32 %v815, %v1332
  %v1395 = vadd.f32 %v816, %v1358
  %v1396 = vadd.f32 %v817, %v1384
  %v1397 = vadd.f32 %v818, %v1309
  %v1398 = vadd.f32 %v819, %v1335
  %v1399 = vadd.f32 %v820, %v1361
  %v1400 = vadd.f32 %v821, %v1387
  %v1401 = vmax.f32 %v1389, 0.0
  %v1402 = vmax.f32 %v1390, 0.0
  %v1403 = vmax.f32 %v1391, 0.0
  %v1404 = vmax.f32 %v1392, 0.0
  %v1405 = vmax.f32 %v1393, 0.0
  %v1406 = vmax.f32 %v1394, 0.0
  %v1407 = vmax.f32 %v1395, 0.0
  %v1408 = vmax.f32 %v1396, 0.0
  %v1409 = vmax.f32 %v1397, 0.0
  %v1410 = vmax.f32 %v1398, 0.0
  %v1411 = vmax.f32 %v1399, 0.0
  %v1412 = vmax.f32 %v1400, 0.0
  %v1413 = vld [vmem:[%s14] sm:$0xff]
  %v1414 = vld [vmem:[%s14 + $0x8] sm:$0xff]
  %v1415 = vld [vmem:[%s14 + $0x10] sm:$0xff]
  %1417 = vset.pattern.permute.xlu0 0
  %1418 = vperm.xlu0 %1417, %v1413
  %v1419 = vpop.permute.xlu0 %1418
  %1422 = vset.pattern.permute.xlu0 0
  %1423 = vperm.xlu0 %1422, %v1414
  %v1424 = vpop.permute.xlu0 %1423
  %1427 = vset.pattern.permute.xlu0 0
  %1428 = vperm.xlu0 %1427, %v1415
  %v1429 = vpop.permute.xlu0 %1428
  %v1431 = vmul.f32 %v1401, %v1419
  %v1432 = vmul.f32 %v1402, %v1419
  %v1433 = vmul.f32 %v1403, %v1419
  %v1434 = vmul.f32 %v1404, %v1419
  %v1435 = vmul.f32 %v1405, %v1424
  %v1436 = vmul.f32 %v1406, %v1424
  %v1437 = vmul.f32 %v1407, %v1424
  %v1438 = vmul.f32 %v1408, %v1424
  %v1439 = vmul.f32 %v1409, %v1429
  %v1440 = vmul.f32 %v1410, %v1429
  %v1441 = vmul.f32 %v1411, %v1429
  %v1442 = vmul.f32 %v1412, %v1429
  %v1443 = vld [vmem:[%s15] sm:$0xff]
  %v1444 = vld [vmem:[%s15 + $0x8] sm:$0xff]
  %v1445 = vld [vmem:[%s15 + $0x10] sm:$0xff]
  %1447 = vset.pattern.permute.xlu0 0
  %1448 = vperm.xlu0 %1447, %v1443
  %v1449 = vpop.permute.xlu0 %1448
  %1452 = vset.pattern.permute.xlu0 0
  %1453 = vperm.xlu0 %1452, %v1444
  %v1454 = vpop.permute.xlu0 %1453
  %1457 = vset.pattern.permute.xlu0 0
  %1458 = vperm.xlu0 %1457, %v1445
  %v1459 = vpop.permute.xlu0 %1458
  %v1461 = vadd.f32 %v1431, %v1449
  %v1462 = vadd.f32 %v1432, %v1449
  %v1463 = vadd.f32 %v1433, %v1449
  %v1464 = vadd.f32 %v1434, %v1449
  %v1465 = vadd.f32 %v1435, %v1454
  %v1466 = vadd.f32 %v1436, %v1454
  %v1467 = vadd.f32 %v1437, %v1454
  %v1468 = vadd.f32 %v1438, %v1454
  %v1469 = vadd.f32 %v1439, %v1459
  %v1470 = vadd.f32 %v1440, %v1459
  %v1471 = vadd.f32 %v1441, %v1459
  %v1472 = vadd.f32 %v1442, %v1459
  %v1473 = vmax.f32 %v1461, 0.0
  %v1474 = vmax.f32 %v1462, 0.0
  %v1475 = vmax.f32 %v1463, 0.0
  %v1476 = vmax.f32 %v1464, 0.0
  %v1477 = vmax.f32 %v1465, 0.0
  %v1478 = vmax.f32 %v1466, 0.0
  %v1479 = vmax.f32 %v1467, 0.0
  %v1480 = vmax.f32 %v1468, 0.0
  %v1481 = vmax.f32 %v1469, 0.0
  %v1482 = vmax.f32 %v1470, 0.0
  %v1483 = vmax.f32 %v1471, 0.0
  %v1484 = vmax.f32 %v1472, 0.0
  %1485 = vrot.lane.b32.xlu0 %v1473, 127
  %v1486 = vpop.permute.xlu0 %1485
  %1487 = vrot.lane.b32.xlu0 %v1477, 127
  %v1488 = vpop.permute.xlu0 %1487
  %1489 = vrot.lane.b32.xlu0 %v1481, 127
  %v1490 = vpop.permute.xlu0 %1489
  %1491 = vrot.lane.b32.xlu0 %v1474, 127
  %v1492 = vpop.permute.xlu0 %1491
  %1493 = vrot.lane.b32.xlu0 %v1478, 127
  %v1494 = vpop.permute.xlu0 %1493
  %1495 = vrot.lane.b32.xlu0 %v1482, 127
  %v1496 = vpop.permute.xlu0 %1495
  %1497 = vrot.lane.b32.xlu0 %v1475, 127
  %v1498 = vpop.permute.xlu0 %1497
  %1499 = vrot.lane.b32.xlu0 %v1479, 127
  %v1500 = vpop.permute.xlu0 %1499
  %1501 = vrot.lane.b32.xlu0 %v1483, 127
  %v1502 = vpop.permute.xlu0 %1501
  %1503 = vrot.lane.b32.xlu0 %v1476, 127
  %v1504 = vpop.permute.xlu0 %1503
  %1505 = vrot.lane.b32.xlu0 %v1480, 127
  %v1506 = vpop.permute.xlu0 %1505
  %1507 = vrot.lane.b32.xlu0 %v1484, 127
  %v1508 = vpop.permute.xlu0 %1507
  %v1509 = vsel %vm334, %v1498, %v1504
  %v1510 = vsel %vm334, %v1500, %v1506
  %v1511 = vsel %vm334, %v1502, %v1508
  %v1512 = vsel %vm334, %v1492, %v1498
  %v1513 = vsel %vm334, %v1494, %v1500
  %v1514 = vsel %vm334, %v1496, %v1502
  %v1515 = vsel %vm334, %v1486, %v1492
  %v1516 = vsel %vm334, %v1488, %v1494
  %v1517 = vsel %vm334, %v1490, %v1496
  %v1518 = vsel %vm334, %v1504, %v1486
  %v1519 = vsel %vm334, %v1506, %v1488
  %v1520 = vsel %vm334, %v1508, %v1490
  %v1521 = vmax.f32 %v1473, %v1515
  %v1522 = vmax.f32 %v1474, %v1512
  %v1523 = vmax.f32 %v1475, %v1509
  %v1524 = vmax.f32 %v1476, %v1518
  %v1525 = vmax.f32 %v1477, %v1516
  %v1526 = vmax.f32 %v1478, %v1513
  %v1527 = vmax.f32 %v1479, %v1510
  %v1528 = vmax.f32 %v1480, %v1519
  %v1529 = vmax.f32 %v1481, %v1517
  %v1530 = vmax.f32 %v1482, %v1514
  %v1531 = vmax.f32 %v1483, %v1511
  %v1532 = vmax.f32 %v1484, %v1520
  %1533 = vrot.lane.b32.xlu0 %v1521, 112
  %v1534 = vpop.permute.xlu0 %1533
  %1535 = vrot.lane.b32.xlu0 %v1525, 112
  %v1536 = vpop.permute.xlu0 %1535
  %1537 = vrot.lane.b32.xlu0 %v1529, 112
  %v1538 = vpop.permute.xlu0 %1537
  %1539 = vrot.lane.b32.xlu0 %v1522, 112
  %v1540 = vpop.permute.xlu0 %1539
  %1541 = vrot.lane.b32.xlu0 %v1526, 112
  %v1542 = vpop.permute.xlu0 %1541
  %1543 = vrot.lane.b32.xlu0 %v1530, 112
  %v1544 = vpop.permute.xlu0 %1543
  %1545 = vrot.lane.b32.xlu0 %v1523, 112
  %v1546 = vpop.permute.xlu0 %1545
  %1547 = vrot.lane.b32.xlu0 %v1527, 112
  %v1548 = vpop.permute.xlu0 %1547
  %1549 = vrot.lane.b32.xlu0 %v1531, 112
  %v1550 = vpop.permute.xlu0 %1549
  %1551 = vrot.lane.b32.xlu0 %v1524, 112
  %v1552 = vpop.permute.xlu0 %1551
  %1553 = vrot.lane.b32.xlu0 %v1528, 112
  %v1554 = vpop.permute.xlu0 %1553
  %1555 = vrot.lane.b32.xlu0 %v1532, 112
  %v1556 = vpop.permute.xlu0 %1555
  %v1557 = vsel %vm414, %v1546, %v1552
  %v1558 = vsel %vm414, %v1548, %v1554
  %v1559 = vsel %vm414, %v1550, %v1556
  %v1560 = vsel %vm414, %v1540, %v1546
  %v1561 = vsel %vm414, %v1542, %v1548
  %v1562 = vsel %vm414, %v1544, %v1550
  %v1563 = vsel %vm414, %v1534, %v1540
  %v1564 = vsel %vm414, %v1536, %v1542
  %v1565 = vsel %vm414, %v1538, %v1544
  %v1566 = vsel %vm414, %v1552, %v1534
  %v1567 = vsel %vm414, %v1554, %v1536
  %v1568 = vsel %vm414, %v1556, %v1538
  %v1569 = vmax.f32 %v1521, %v1563
  %v1570 = vmax.f32 %v1522, %v1560
  %v1571 = vmax.f32 %v1523, %v1557
  %v1572 = vmax.f32 %v1524, %v1566
  %v1573 = vmax.f32 %v1525, %v1564
  %v1574 = vmax.f32 %v1526, %v1561
  %v1575 = vmax.f32 %v1527, %v1558
  %v1576 = vmax.f32 %v1528, %v1567
  %v1577 = vmax.f32 %v1529, %v1565
  %v1578 = vmax.f32 %v1530, %v1562
  %v1579 = vmax.f32 %v1531, %v1559
  %v1580 = vmax.f32 %v1532, %v1568
  %v1581 = vld [vmem:[%s16] sm:$0xff]
  %v1582 = vld [vmem:[%s16 + $0x8] sm:$0xff]
  %v1583 = vld [vmem:[%s16 + $0x10] sm:$0xff]
  %v1584 = vld [vmem:[%s16 + $0x18] sm:$0xff]
  %v1585 = vld [vmem:[%s16 + $0x20] sm:$0xff]
  %v1586 = vld [vmem:[%s16 + $0x28] sm:$0xff]
  %v1587 = vld [vmem:[%s16 + $0x30] sm:$0xff]
  %v1588 = vld [vmem:[%s16 + $0x38] sm:$0xff]
  %v1589 = vld [vmem:[%s16 + $0x40] sm:$0xff]
  %v1590 = vld [vmem:[%s16 + $0x48] sm:$0xff]
  %v1591 = vld [vmem:[%s16 + $0x50] sm:$0xff]
  %v1592 = vld [vmem:[%s16 + $0x58] sm:$0xff]
  %v1593 = vld [vmem:[%s16 + $0x60] sm:$0xff]
  %v1594 = vld [vmem:[%s16 + $0x68] sm:$0xff]
  %v1595 = vld [vmem:[%s16 + $0x70] sm:$0xff]
  %v1596 = vld [vmem:[%s16 + $0x78] sm:$0xff]
  %v1597 = vld [vmem:[%s16 + $0x80] sm:$0xff]
  %v1598 = vld [vmem:[%s16 + $0x88] sm:$0xff]
  %v1599 = vld [vmem:[%s16 + $0x90] sm:$0xff]
  %v1600 = vld [vmem:[%s16 + $0x98] sm:$0xff]
  %v1601 = vld [vmem:[%s16 + $0xa0] sm:$0xff]
  %v1602 = vld [vmem:[%s16 + $0xa8] sm:$0xff]
  %v1603 = vld [vmem:[%s16 + $0xb0] sm:$0xff]
  %v1604 = vld [vmem:[%s16 + $0xb8] sm:$0xff]
  %v1605 = vld [vmem:[%s16 + $0xc0] sm:$0xff]
  %v1606 = vld [vmem:[%s16 + $0xc8] sm:$0xff]
  %v1607 = vld [vmem:[%s16 + $0xd0] sm:$0xff]
  %v1608 = vld [vmem:[%s16 + $0xd8] sm:$0xff]
  %v1609 = vld [vmem:[%s16 + $0xe0] sm:$0xff]
  %v1610 = vld [vmem:[%s16 + $0xe8] sm:$0xff]
  %v1611 = vld [vmem:[%s16 + $0xf0] sm:$0xff]
  %v1612 = vld [vmem:[%s16 + $0xf8] sm:$0xff]
  %v1613 = vld [vmem:[%s16 + $0x100] sm:$0xff]
  %v1614 = vld [vmem:[%s16 + $0x108] sm:$0xff]
  %v1615 = vld [vmem:[%s16 + $0x110] sm:$0xff]
  %v1616 = vld [vmem:[%s16 + $0x118] sm:$0xff]
  %v1617 = vld [vmem:[%s16 + $0x120] sm:$0xff]
  %v1618 = vld [vmem:[%s16 + $0x128] sm:$0xff]
  %v1619 = vld [vmem:[%s16 + $0x130] sm:$0xff]
  %v1620 = vld [vmem:[%s16 + $0x138] sm:$0xff]
  %v1621 = vld [vmem:[%s16 + $0x140] sm:$0xff]
  %v1622 = vld [vmem:[%s16 + $0x148] sm:$0xff]
  %v1623 = vld [vmem:[%s16 + $0x150] sm:$0xff]
  %v1624 = vld [vmem:[%s16 + $0x158] sm:$0xff]
  %v1625 = vld [vmem:[%s16 + $0x160] sm:$0xff]
  %v1626 = vld [vmem:[%s16 + $0x168] sm:$0xff]
  %v1627 = vld [vmem:[%s16 + $0x170] sm:$0xff]
  %v1628 = vld [vmem:[%s16 + $0x178] sm:$0xff]
  %v1629 = vld [vmem:[%s16 + $0x180] sm:$0xff]
  %v1630 = vld [vmem:[%s16 + $0x188] sm:$0xff]
  %v1631 = vld [vmem:[%s16 + $0x190] sm:$0xff]
  %v1632 = vld [vmem:[%s16 + $0x198] sm:$0xff]
  %v1633 = vld [vmem:[%s16 + $0x1a0] sm:$0xff]
  %v1634 = vld [vmem:[%s16 + $0x1a8] sm:$0xff]
  %v1635 = vld [vmem:[%s16 + $0x1b0] sm:$0xff]
  %v1636 = vld [vmem:[%s16 + $0x1b8] sm:$0xff]
  %v1637 = vld [vmem:[%s16 + $0x1c0] sm:$0xff]
  %v1638 = vld [vmem:[%s16 + $0x1c8] sm:$0xff]
  %v1639 = vld [vmem:[%s16 + $0x1d0] sm:$0xff]
  %v1640 = vld [vmem:[%s16 + $0x1d8] sm:$0xff]
  %v1641 = vld [vmem:[%s16 + $0x1e0] sm:$0xff]
  %v1642 = vld [vmem:[%s16 + $0x1e8] sm:$0xff]
  %v1643 = vld [vmem:[%s16 + $0x1f0] sm:$0xff]
  %v1644 = vld [vmem:[%s16 + $0x1f8] sm:$0xff]
  %1645 = vmatpush.msra.mxu0 %v1596
  %1646 = vmatpush.msra.mxu0 %v1595
  %1647 = vmatpush.msra.mxu0 %v1594
  %1648 = vmatpush.msra.mxu0 %v1593
  %1649 = vmatpush.msra.mxu0 %v1592
  %1650 = vmatpush.msra.mxu0 %v1591
  %1651 = vmatpush.msra.mxu0 %v1590
  %1652 = vmatpush.msra.mxu0 %v1589
  %1653 = vmatpush.msra.mxu0 %v1588
  %1654 = vmatpush.msra.mxu0 %v1587
  %1655 = vmatpush.msra.mxu0 %v1586
  %1656 = vmatpush.msra.mxu0 %v1585
  %1657 = vmatpush.msra.mxu0 %v1584
  %1658 = vmatpush.msra.mxu0 %v1583
  %1659 = vmatpush.msra.mxu0 %v1582
  %1660 = vmatpush.msra.mxu0 %v1581
  %1661 = vmatmul.f32.gmra.mxu0 %v1569
  %v1662 = vpop.f32.mrf.mxu0
  %v1663 = vadd.f32 0.0, %v1662
  %1664 = vmatmul.f32.gmra.mxu0 %v1573
  %v1665 = vpop.f32.mrf.mxu0
  %v1666 = vadd.f32 0.0, %v1665
  %1667 = vmatmul.f32.gmra.mxu0 %v1577
  %v1668 = vpop.f32.mrf.mxu0
  %v1669 = vadd.f32 0.0, %v1668
  %1670 = vdwg.mxu0
  %1671 = vmatpush.msra.mxu0 %v1612
  %1672 = vmatpush.msra.mxu0 %v1611
  %1673 = vmatpush.msra.mxu0 %v1610
  %1674 = vmatpush.msra.mxu0 %v1609
  %1675 = vmatpush.msra.mxu0 %v1608
  %1676 = vmatpush.msra.mxu0 %v1607
  %1677 = vmatpush.msra.mxu0 %v1606
  %1678 = vmatpush.msra.mxu0 %v1605
  %1679 = vmatpush.msra.mxu0 %v1604
  %1680 = vmatpush.msra.mxu0 %v1603
  %1681 = vmatpush.msra.mxu0 %v1602
  %1682 = vmatpush.msra.mxu0 %v1601
  %1683 = vmatpush.msra.mxu0 %v1600
  %1684 = vmatpush.msra.mxu0 %v1599
  %1685 = vmatpush.msra.mxu0 %v1598
  %1686 = vmatpush.msra.mxu0 %v1597
  %1687 = vmatmul.f32.gmra.mxu0 %v1570
  %v1688 = vpop.f32.mrf.mxu0
  %v1689 = vadd.f32 %v1663, %v1688
  %1690 = vmatmul.f32.gmra.mxu0 %v1574
  %v1691 = vpop.f32.mrf.mxu0
  %v1692 = vadd.f32 %v1666, %v1691
  %1693 = vmatmul.f32.gmra.mxu0 %v1578
  %v1694 = vpop.f32.mrf.mxu0
  %v1695 = vadd.f32 %v1669, %v1694
  %1696 = vdwg.mxu0
  %1697 = vmatpush.msra.mxu0 %v1628
  %1698 = vmatpush.msra.mxu0 %v1627
  %1699 = vmatpush.msra.mxu0 %v1626
  %1700 = vmatpush.msra.mxu0 %v1625
  %1701 = vmatpush.msra.mxu0 %v1624
  %1702 = vmatpush.msra.mxu0 %v1623
  %1703 = vmatpush.msra.mxu0 %v1622
  %1704 = vmatpush.msra.mxu0 %v1621
  %1705 = vmatpush.msra.mxu0 %v1620
  %1706 = vmatpush.msra.mxu0 %v1619
  %1707 = vmatpush.msra.mxu0 %v1618
  %1708 = vmatpush.msra.mxu0 %v1617
  %1709 = vmatpush.msra.mxu0 %v1616
  %1710 = vmatpush.msra.mxu0 %v1615
  %1711 = vmatpush.msra.mxu0 %v1614
  %1712 = vmatpush.msra.mxu0 %v1613
  %1713 = vmatmul.f32.gmra.mxu0 %v1571
  %v1714 = vpop.f32.mrf.mxu0
  %v1715 = vadd.f32 %v1689, %v1714
  %1716 = vmatmul.f32.gmra.mxu0 %v1575
  %v1717 = vpop.f32.mrf.mxu0
  %v1718 = vadd.f32 %v1692, %v1717
  %1719 = vmatmul.f32.gmra.mxu0 %v1579
  %v1720 = vpop.f32.mrf.mxu0
  %v1721 = vadd.f32 %v1695, %v1720
  %1722 = vdwg.mxu0
  %1723 = vmatpush.msra.mxu0 %v1644
  %1724 = vmatpush.msra.mxu0 %v1643
  %1725 = vmatpush.msra.mxu0 %v1642
  %1726 = vmatpush.msra.mxu0 %v1641
  %1727 = vmatpush.msra.mxu0 %v1640
  %1728 = vmatpush.msra.mxu0 %v1639
  %1729 = vmatpush.msra.mxu0 %v1638
  %1730 = vmatpush.msra.mxu0 %v1637
  %1731 = vmatpush.msra.mxu0 %v1636
  %1732 = vmatpush.msra.mxu0 %v1635
  %1733 = vmatpush.msra.mxu0 %v1634
  %1734 = vmatpush.msra.mxu0 %v1633
  %1735 = vmatpush.msra.mxu0 %v1632
  %1736 = vmatpush.msra.mxu0 %v1631
  %1737 = vmatpush.msra.mxu0 %v1630
  %1738 = vmatpush.msra.mxu0 %v1629
  %1739 = vmatmul.f32.gmra.mxu0 %v1572
  %v1740 = vpop.f32.mrf.mxu0
  %v1741 = vadd.f32 %v1715, %v1740
  %1742 = vmatmul.f32.gmra.mxu0 %v1576
  %v1743 = vpop.f32.mrf.mxu0
  %v1744 = vadd.f32 %v1718, %v1743
  %1745 = vmatmul.f32.gmra.mxu0 %v1580
  %v1746 = vpop.f32.mrf.mxu0
  %v1747 = vadd.f32 %v1721, %v1746
  %1748 = vdwg.mxu0
  %1749 = vst [vmem:[%s17] sm:$0xff] %v1741
  %1750 = vst [vmem:[%s17 + $0x8] sm:$0xff] %v1744
  %1751 = vst [vmem:[%s17 + $0x10] sm:$0xff] %v1747
  // Predicated region
  $region70: #{shufflenet_block_forward.1} parent=0 // pred_check
    _
  $region71: #{shufflenet_block_forward.1} parent=0 // pred_check_branch
    %1753 = sbr.rel (0) target = $region73
  $region72: #{shufflenet_block_forward.1} parent=0 // pred_region
    _
  $region73: #{shufflenet_block_forward.1} parent=0 // pred_fallthru
    _
  // Predicated region
  $region74: #{shufflenet_block_forward.1} parent=0 // pred_check
    _
  $region75: #{shufflenet_block_forward.1} parent=0 // pred_check_branch
    %1755 = sbr.rel (0) target = $region77
  $region76: #{shufflenet_block_forward.1} parent=0 // pred_region
    _
  $region77: #{shufflenet_block_forward.1} parent=0 // pred_fallthru
    _

</llo_original>
